<compile_context>
chip_gen: v7x
topology: tpu7x:2x2x1
jax: 0.10.0
libtpu: 0.0.40
codegen_flags: <defaults>
</compile_context>

<pallas_src>
import functools

import jax
import jax.numpy as jnp
import numpy as np
from jax.experimental import pallas as pl
from jax.experimental.pallas import tpu as pltpu


def _round_up(n, m):
    return ((n + m - 1) // m) * m


def ifm_kernel(num_fields,
               emb_ref, lin_ref,
               w1_ref, b1_ref, w2_ref, b2_ref, wp_ref, bp_ref,
               rep_ref, sumf_ref, bias_ref, out_ref):
    """One batch tile of the IFM forward pass (everything after the gathers)."""
    emb_bf = emb_ref[...]                                 # (Bt, F*D) bf16 (MXU operand)
    emb = emb_bf.astype(jnp.float32)                      # f32 copy for the FM elementwise math

    # ---- Factor Estimating Network (FEN): MLP -> softmax attention ----
    # bf16 operands, f32 accumulation on the MXU.
    h = jnp.dot(emb_bf, w1_ref[...], preferred_element_type=jnp.float32) + b1_ref[...]
    h = jnp.maximum(h, 0.0)
    h = jnp.dot(h.astype(jnp.bfloat16), w2_ref[...],
                preferred_element_type=jnp.float32) + b2_ref[...]
    h = jnp.maximum(h, 0.0)
    logits = jnp.dot(h.astype(jnp.bfloat16), wp_ref[...],
                     preferred_element_type=jnp.float32) + bp_ref[...]   # (Bt, F)

    logits = logits - jnp.max(logits, axis=-1, keepdims=True)
    e = jnp.exp(logits)
    inv_den = pl.reciprocal(jnp.sum(e, axis=-1, keepdims=True), approx=True)  # EUP slot
    att = (num_fields * e) * inv_den                      # (Bt, F) f32

    # ---- reweight embeddings (flat layout; broadcast att over D via 0/1 matmul) ----
    # Kept in f32: att feeds the cancellation-sensitive FM term below.
    att_rep = jnp.dot(att, rep_ref[...], preferred_element_type=jnp.float32)  # (Bt, F*D)
    emb_s = emb * att_rep                                 # (Bt, F*D) f32

    # ---- FactorizationMachine (reduce_sum=True); field-sum as constant matmul ----
    sum_f = jnp.dot(emb_s, sumf_ref[...], preferred_element_type=jnp.float32)  # (Bt, D)
    square_of_sum = jnp.sum(sum_f * sum_f, axis=-1, keepdims=True)    # (Bt, 1)
    sum_of_square = jnp.sum(emb_s * emb_s, axis=-1, keepdims=True)    # (Bt, 1)
    fm = 0.5 * (square_of_sum - sum_of_square)                        # (Bt, 1)

    # ---- FeaturesLinear with attention weights ----
    lin = jnp.sum(lin_ref[...] * att, axis=-1, keepdims=True) + bias_ref[0, 0]

    out_ref[...] = lin + fm


def prepare_kernel_params(params):
    """One-time preprocessing of the raw parameters for the kernel.

    Pads the MLP hidden widths to 128 lanes, casts MXU weight operands to
    bf16, and builds the constant 0/1 broadcast/reduction matrices.  Call
    once (e.g. at model load), NOT per forward call.
    """
    w1, b1 = params["w1"], params["b1"]
    w2, b2 = params["w2"], params["b2"]
    wp, bp = params["wp"], params["bp"]

    FD, h1 = w1.shape
    h2 = w2.shape[1]
    D = params["emb_table"].shape[1]
    F = FD // D
    H1 = _round_up(h1, 128)
    H2 = _round_up(h2, 128)

    # Zero-padding is exact (relu(0)=0, zero weight rows/cols); bf16 casts are
    # the intended MXU operand precision.
    w1p = jnp.zeros((FD, H1), jnp.float32).at[:, :h1].set(w1).astype(jnp.bfloat16)
    b1p = jnp.zeros((1, H1), jnp.float32).at[:, :h1].set(b1)
    w2p = jnp.zeros((H1, H2), jnp.float32).at[:h1, :h2].set(w2).astype(jnp.bfloat16)
    b2p = jnp.zeros((1, H2), jnp.float32).at[:, :h2].set(b2)
    wpp = jnp.zeros((H2, F), jnp.float32).at[:h2, :].set(wp).astype(jnp.bfloat16)
    bpp = bp.reshape(1, F)

    # rep_mat[f, f*D + d] = 1 : broadcast att over embedding dims (att @ rep_mat)
    # sum_mat[f*D + d, d] = 1 : sum over fields on the flat layout (emb_s @ sum_mat)
    rep_mat = jnp.kron(jnp.eye(F, dtype=jnp.float32),
                       jnp.ones((1, D), jnp.float32))                 # (F, FD) f32
    sum_mat = jnp.kron(jnp.ones((F, 1), jnp.float32),
                       jnp.eye(D, dtype=jnp.float32))                 # (FD, D) f32

    return dict(
        emb_table=params["emb_table"], lin_table=params["lin_table"],
        offsets=params["offsets"],
        bias11=jnp.asarray(params["bias"], jnp.float32).reshape(1, 1),
        w1p=w1p, b1p=b1p, w2p=w2p, b2p=b2p, wpp=wpp, bpp=bpp,
        rep_mat=rep_mat, sum_mat=sum_mat,
        F=F, D=D, FD=FD, H1=H1, H2=H2,
    )


def ifm_forward(x, kp, *, b_tile_max=2048):
    """x: int32 (B, F) raw field indices; kp: output of prepare_kernel_params.

    Returns float32 (B, 1).
    """
    F, D, FD = kp["F"], kp["D"], kp["FD"]
    H1, H2 = kp["H1"], kp["H2"]
    B = x.shape[0]

    # ---- batch tiling: >=2 grid steps when possible (v7x has 2 TensorCores),
    # rows aligned to 16 (bf16 sublane packing). Per-gen b_tile_max guidance:
    # v5e <= 2048 (16 MiB scoped VMEM default), v6e/v7x up to 4096.
    b_tile = min(b_tile_max, _round_up(max(-(-B // 2), 16), 16))
    B_pad = _round_up(B, b_tile)

    # Pad the cheap int32 index matrix BEFORE the gather (row 0 is a valid
    # table row), so the big bf16 gathered tensor is born tile-aligned and we
    # never jnp.pad-copy it.
    idx = x.astype(jnp.int32) + kp["offsets"][None, :]                # (B, F)
    if B_pad != B:
        idx = jnp.pad(idx, ((0, B_pad - B), (0, 0)))

    # Embedding gathers stay as XLA glue.
    # TODO(synk): fuse the gather into the kernel (emb_table in pl.ANY +
    #   scalar-prefetched idx + manual double-buffered row DMAs).
    emb_flat = kp["emb_table"][idx].reshape(B_pad, FD)                # (B_pad, F*D) bf16
    lin_w = kp["lin_table"][idx][..., 0]                              # (B_pad, F)   f32

    kernel = functools.partial(ifm_kernel, float(F))

    def resident(shape):
        # Weights / constants stay VMEM-resident across all batch tiles
        # (constant index_map -> no re-DMA after the first tile).
        return pl.BlockSpec(shape, lambda i, _n=len(shape): (0,) * _n)

    grid = (B_pad // b_tile,)

    weight_bytes = ((FD * H1 + H1 * H2 + H2 * F) * 2            # bf16 weights
                    + (F * FD + FD * D) * 4                     # f32 constants
                    + (H1 + H2 + F + 1) * 4)                    # biases
    cost = pl.CostEstimate(
        flops=2 * B_pad * (FD * H1 + H1 * H2 + H2 * F + F * FD + FD * D),
        transcendentals=B_pad * (F + 1),
        bytes_accessed=B_pad * (FD * 2 + F * 4 + 4) + weight_bytes,
    )

    out = pl.pallas_call(
        kernel,
        out_shape=jax.ShapeDtypeStruct((B_pad, 1), jnp.float32),
        grid=grid,
        in_specs=[
            pl.BlockSpec((b_tile, FD), lambda i: (i, 0)),        # emb_flat (bf16)
            pl.BlockSpec((b_tile, F), lambda i: (i, 0)),         # lin_w (f32)
            resident((FD, H1)),                                  # w1 (bf16)
            resident((1, H1)),                                   # b1
            resident((H1, H2)),                                  # w2 (bf16)
            resident((1, H2)),                                   # b2
            resident((H2, F)),                                   # wp (bf16)
            resident((1, F)),                                    # bp
            resident((F, FD)),                                   # rep_mat (f32)
            resident((FD, D)),                                   # sum_mat (f32)
            pl.BlockSpec(memory_space=pltpu.MemorySpace.SMEM),   # bias (1,1) scalar
        ],
        out_specs=pl.BlockSpec((b_tile, 1), lambda i: (i, 0)),
        compiler_params=pltpu.CompilerParams(
            dimension_semantics=("parallel",)),
        cost_estimate=cost,
    )(emb_flat, lin_w, kp["w1p"], kp["b1p"], kp["w2p"], kp["b2p"],
      kp["wpp"], kp["bpp"], kp["rep_mat"], kp["sum_mat"], kp["bias11"])

    return out[:B]


def ifm_reference(x, params):
    """Pure-JAX reference.

    Models the same mixed-precision scheme the kernel uses on the MXU
    (bf16 matmul operands, f32 accumulation); FM / linear / softmax math in
    f32.  Independent implementation of the IFM forward for validation.
    """
    emb_table = params["emb_table"]
    lin_table = params["lin_table"]
    bias      = params["bias"]
    w1, b1    = params["w1"], params["b1"]
    w2, b2    = params["w2"], params["b2"]
    wp, bp    = params["wp"], params["bp"]
    offsets   = params["offsets"]

    def mm(a, b):   # bf16 operands, f32 accumulation (MXU-style)
        return jnp.dot(a.astype(jnp.bfloat16), b.astype(jnp.bfloat16),
                       preferred_element_type=jnp.float32)

    idx = x + offsets[None, :]
    emb_x = emb_table[idx].astype(jnp.float32)
    lin_w = lin_table[idx][..., 0]
    B, F, D = emb_x.shape

    h = jax.nn.relu(mm(emb_x.reshape(B, F * D), w1) + b1)
    h = jax.nn.relu(mm(h, w2) + b2)
    att = F * jax.nn.softmax(mm(h, wp) + bp, axis=-1)

    emb_s = emb_x * att[:, :, None]
    sos = jnp.sum(emb_s, axis=1) ** 2
    ssq = jnp.sum(emb_s ** 2, axis=1)
    fm = 0.5 * jnp.sum(sos - ssq, axis=-1, keepdims=True)
    lin = jnp.sum(lin_w * att, axis=-1, keepdims=True) + bias
    return lin + fm


def init_params(key, field_dims, embed_dim, embed_dims):
    F = len(field_dims)
    total = int(np.sum(field_dims))
    in_dim = F * embed_dim
    h1, h2 = embed_dims
    ks = jax.random.split(key, 8)
    params = {
        # embedding table stored in bf16 (halves HBM traffic of the gathered tensor)
        "emb_table": (0.1 * jax.random.normal(ks[0], (total, embed_dim), jnp.float32)
                      ).astype(jnp.bfloat16),
        "lin_table": 0.1 * jax.random.normal(ks[1], (total, 1), jnp.float32),
        "bias":      jnp.float32(0.01),
        "w1": 0.1 * jax.random.normal(ks[2], (in_dim, h1), jnp.float32),
        "b1": 0.01 * jnp.ones((h1,), jnp.float32),
        "w2": 0.1 * jax.random.normal(ks[3], (h1, h2), jnp.float32),
        "b2": 0.01 * jnp.ones((h2,), jnp.float32),
        "wp": 0.1 * jax.random.normal(ks[4], (h2, F), jnp.float32),
        "bp": jnp.zeros((F,), jnp.float32),
        "offsets": jnp.asarray(np.concatenate(([0], np.cumsum(field_dims)[:-1])),
                               jnp.int32),
    }
    return params


if __name__ == "__main__":
    field_dims = [5, 7, 3, 8, 6, 4, 9, 2, 5, 6]   # 10 fields (field_len=10)
    embed_dim = 16
    embed_dims = (32, 32)
    B = 40   # not tile-aligned -> exercises idx padding; gives a 2-step batch grid

    key = jax.random.PRNGKey(0)
    k_param, k_x = jax.random.split(key)
    params = init_params(k_param, field_dims, embed_dim, embed_dims)
    kparams = prepare_kernel_params(params)      # one-time: pad/cast weights, kron constants

    # deterministic synthetic categorical inputs, valid per-field index ranges
    raw = jax.random.randint(k_x, (B, len(field_dims)), 0, 10_000, dtype=jnp.int32)
    x = raw % jnp.asarray(field_dims, jnp.int32)[None, :]

    fwd = jax.jit(lambda xb: ifm_forward(xb, kparams))
    out = jax.block_until_ready(fwd(x))
    ref = jax.block_until_ready(ifm_reference(x, params))

    assert out.shape == (B, 1), out.shape
    # approx reciprocal in the softmax denominator loosens tolerance slightly
    np.testing.assert_allclose(np.asarray(out), np.asarray(ref),
                               rtol=5e-3, atol=5e-3)
    print("KERNEL_OK")
</pallas_src>

<mosaic_0001>
module attributes {stable_mosaic.version = 11 : i64} {
  func.func @ifm_kernel(%arg0: i32, %arg1: memref<32x160xbf16, #tpu.memory_space<vmem>>, %arg2: memref<32x10xf32, #tpu.memory_space<vmem>>, %arg3: memref<160x128xbf16, #tpu.memory_space<vmem>>, %arg4: memref<1x128xf32, #tpu.memory_space<vmem>>, %arg5: memref<128x128xbf16, #tpu.memory_space<vmem>>, %arg6: memref<1x128xf32, #tpu.memory_space<vmem>>, %arg7: memref<128x10xbf16, #tpu.memory_space<vmem>>, %arg8: memref<1x10xf32, #tpu.memory_space<vmem>>, %arg9: memref<10x160xf32, #tpu.memory_space<vmem>>, %arg10: memref<160x16xf32, #tpu.memory_space<vmem>>, %arg11: memref<1x1xf32, #tpu.memory_space<smem>>, %arg12: memref<32x1xf32, #tpu.memory_space<vmem>>) attributes {dimension_semantics = [#tpu.dimension_semantics<parallel>], iteration_bounds = array<i64: 2>, scalar_prefetch = 0 : i64, scratch_operands = 0 : i64, tpu.core_type = #tpu.core_type<tc>, window_params = [{transform_indices = @transform_0, window_bounds = array<i64: 32, 160>}, {transform_indices = @transform_1, window_bounds = array<i64: 32, 10>}, {pipeline_mode = #tpu.pipeline_mode<synchronous>, transform_indices = @transform_2, window_bounds = array<i64: 160, 128>}, {pipeline_mode = #tpu.pipeline_mode<synchronous>, transform_indices = @transform_3, window_bounds = array<i64: 1, 128>}, {pipeline_mode = #tpu.pipeline_mode<synchronous>, transform_indices = @transform_4, window_bounds = array<i64: 128, 128>}, {pipeline_mode = #tpu.pipeline_mode<synchronous>, transform_indices = @transform_5, window_bounds = array<i64: 1, 128>}, {pipeline_mode = #tpu.pipeline_mode<synchronous>, transform_indices = @transform_6, window_bounds = array<i64: 128, 10>}, {pipeline_mode = #tpu.pipeline_mode<synchronous>, transform_indices = @transform_7, window_bounds = array<i64: 1, 10>}, {pipeline_mode = #tpu.pipeline_mode<synchronous>, transform_indices = @transform_8, window_bounds = array<i64: 10, 160>}, {pipeline_mode = #tpu.pipeline_mode<synchronous>, transform_indices = @transform_9, window_bounds = array<i64: 160, 16>}, {transform_indices = @transform_10, window_bounds = array<i64: 1, 1>}, {transform_indices = @transform_11, window_bounds = array<i64: 32, 1>}]} {
    %c0 = arith.constant 0 : index
    %c0_0 = arith.constant 0 : index
    %0 = vector.load %arg1[%c0, %c0_0] : memref<32x160xbf16, #tpu.memory_space<vmem>>, vector<32x160xbf16>
    %1 = arith.extf %0 : vector<32x160xbf16> to vector<32x160xf32>
    %c0_1 = arith.constant 0 : index
    %c0_2 = arith.constant 0 : index
    %2 = vector.load %arg3[%c0_1, %c0_2] : memref<160x128xbf16, #tpu.memory_space<vmem>>, vector<160x128xbf16>
    %cst = arith.constant dense<0.000000e+00> : vector<32x128xf32>
    %3 = tpu.matmul %0, %2, %cst {dimension_numbers = #tpu.dot_dimension_numbers<[1], [0], [0], [1], [0, 0, 1, 1], [], []>} : vector<32x160xbf16>, vector<160x128xbf16>, vector<32x128xf32> -> vector<32x128xf32>
    %c0_3 = arith.constant 0 : index
    %c0_4 = arith.constant 0 : index
    %4 = vector.load %arg4[%c0_3, %c0_4] : memref<1x128xf32, #tpu.memory_space<vmem>>, vector<1x128xf32>
    %5 = vector.broadcast %4 : vector<1x128xf32> to vector<32x128xf32>
    %6 = arith.addf %3, %5 : vector<32x128xf32>
    %cst_5 = arith.constant 0.000000e+00 : f32
    %7 = vector.broadcast %cst_5 : f32 to vector<32x128xf32>
    %8 = arith.maximumf %6, %7 : vector<32x128xf32>
    %9 = arith.truncf %8 : vector<32x128xf32> to vector<32x128xbf16>
    %c0_6 = arith.constant 0 : index
    %c0_7 = arith.constant 0 : index
    %10 = vector.load %arg5[%c0_6, %c0_7] : memref<128x128xbf16, #tpu.memory_space<vmem>>, vector<128x128xbf16>
    %cst_8 = arith.constant dense<0.000000e+00> : vector<32x128xf32>
    %11 = tpu.matmul %9, %10, %cst_8 {dimension_numbers = #tpu.dot_dimension_numbers<[1], [0], [0], [1], [0, 0, 1, 1], [], []>} : vector<32x128xbf16>, vector<128x128xbf16>, vector<32x128xf32> -> vector<32x128xf32>
    %c0_9 = arith.constant 0 : index
    %c0_10 = arith.constant 0 : index
    %12 = vector.load %arg6[%c0_9, %c0_10] : memref<1x128xf32, #tpu.memory_space<vmem>>, vector<1x128xf32>
    %13 = vector.broadcast %12 : vector<1x128xf32> to vector<32x128xf32>
    %14 = arith.addf %11, %13 : vector<32x128xf32>
    %cst_11 = arith.constant 0.000000e+00 : f32
    %15 = vector.broadcast %cst_11 : f32 to vector<32x128xf32>
    %16 = arith.maximumf %14, %15 : vector<32x128xf32>
    %17 = arith.truncf %16 : vector<32x128xf32> to vector<32x128xbf16>
    %c0_12 = arith.constant 0 : index
    %c0_13 = arith.constant 0 : index
    %18 = vector.load %arg7[%c0_12, %c0_13] : memref<128x10xbf16, #tpu.memory_space<vmem>>, vector<128x10xbf16>
    %cst_14 = arith.constant dense<0.000000e+00> : vector<32x10xf32>
    %19 = tpu.matmul %17, %18, %cst_14 {dimension_numbers = #tpu.dot_dimension_numbers<[1], [0], [0], [1], [0, 0, 1, 1], [], []>} : vector<32x128xbf16>, vector<128x10xbf16>, vector<32x10xf32> -> vector<32x10xf32>
    %c0_15 = arith.constant 0 : index
    %c0_16 = arith.constant 0 : index
    %20 = vector.load %arg8[%c0_15, %c0_16] : memref<1x10xf32, #tpu.memory_space<vmem>>, vector<1x10xf32>
    %21 = vector.broadcast %20 : vector<1x10xf32> to vector<32x10xf32>
    %22 = arith.addf %19, %21 : vector<32x10xf32>
    %cst_17 = arith.constant dense<0xFF800000> : vector<32xf32>
    %23 = vector.multi_reduction <maximumf>, %22, %cst_17 [1] : vector<32x10xf32> to vector<32xf32>
    %24 = vector.shape_cast %23 : vector<32xf32> to vector<32x1xf32>
    %25 = vector.broadcast %24 : vector<32x1xf32> to vector<32x10xf32>
    %26 = arith.subf %22, %25 : vector<32x10xf32>
    %27 = math.exp %26 : vector<32x10xf32>
    %cst_18 = arith.constant dense<0.000000e+00> : vector<32xf32>
    %28 = vector.multi_reduction <add>, %27, %cst_18 [1] : vector<32x10xf32> to vector<32xf32>
    %29 = vector.shape_cast %28 : vector<32xf32> to vector<32x1xf32>
    %30 = tpu.reciprocal %29 {approx = true} : vector<32x1xf32> -> vector<32x1xf32>
    %cst_19 = arith.constant 1.000000e+01 : f32
    %31 = vector.broadcast %cst_19 : f32 to vector<32x10xf32>
    %32 = arith.mulf %31, %27 : vector<32x10xf32>
    %33 = vector.broadcast %30 : vector<32x1xf32> to vector<32x10xf32>
    %34 = arith.mulf %32, %33 : vector<32x10xf32>
    %c0_20 = arith.constant 0 : index
    %c0_21 = arith.constant 0 : index
    %35 = vector.load %arg9[%c0_20, %c0_21] : memref<10x160xf32, #tpu.memory_space<vmem>>, vector<10x160xf32>
    %cst_22 = arith.constant dense<0.000000e+00> : vector<32x160xf32>
    %36 = tpu.matmul %34, %35, %cst_22 {dimension_numbers = #tpu.dot_dimension_numbers<[1], [0], [0], [1], [0, 0, 1, 1], [], []>} : vector<32x10xf32>, vector<10x160xf32>, vector<32x160xf32> -> vector<32x160xf32>
    %37 = arith.mulf %1, %36 : vector<32x160xf32>
    %c0_23 = arith.constant 0 : index
    %c0_24 = arith.constant 0 : index
    %38 = vector.load %arg10[%c0_23, %c0_24] : memref<160x16xf32, #tpu.memory_space<vmem>>, vector<160x16xf32>
    %cst_25 = arith.constant dense<0.000000e+00> : vector<32x16xf32>
    %39 = tpu.matmul %37, %38, %cst_25 {dimension_numbers = #tpu.dot_dimension_numbers<[1], [0], [0], [1], [0, 0, 1, 1], [], []>} : vector<32x160xf32>, vector<160x16xf32>, vector<32x16xf32> -> vector<32x16xf32>
    %40 = arith.mulf %39, %39 : vector<32x16xf32>
    %cst_26 = arith.constant dense<0.000000e+00> : vector<32xf32>
    %41 = vector.multi_reduction <add>, %40, %cst_26 [1] : vector<32x16xf32> to vector<32xf32>
    %42 = vector.shape_cast %41 : vector<32xf32> to vector<32x1xf32>
    %43 = arith.mulf %37, %37 : vector<32x160xf32>
    %cst_27 = arith.constant dense<0.000000e+00> : vector<32xf32>
    %44 = vector.multi_reduction <add>, %43, %cst_27 [1] : vector<32x160xf32> to vector<32xf32>
    %45 = vector.shape_cast %44 : vector<32xf32> to vector<32x1xf32>
    %46 = arith.subf %42, %45 : vector<32x1xf32>
    %cst_28 = arith.constant 5.000000e-01 : f32
    %47 = vector.broadcast %cst_28 : f32 to vector<32x1xf32>
    %48 = arith.mulf %47, %46 : vector<32x1xf32>
    %c0_29 = arith.constant 0 : index
    %c0_30 = arith.constant 0 : index
    %49 = vector.load %arg2[%c0_29, %c0_30] : memref<32x10xf32, #tpu.memory_space<vmem>>, vector<32x10xf32>
    %50 = arith.mulf %49, %34 : vector<32x10xf32>
    %cst_31 = arith.constant dense<0.000000e+00> : vector<32xf32>
    %51 = vector.multi_reduction <add>, %50, %cst_31 [1] : vector<32x10xf32> to vector<32xf32>
    %52 = vector.shape_cast %51 : vector<32xf32> to vector<32x1xf32>
    %c0_32 = arith.constant 0 : index
    %c0_33 = arith.constant 0 : index
    %53 = memref.load %arg11[%c0_32, %c0_33] : memref<1x1xf32, #tpu.memory_space<smem>>
    %54 = vector.broadcast %53 : f32 to vector<32x1xf32>
    %55 = arith.addf %52, %54 : vector<32x1xf32>
    %56 = arith.addf %55, %48 : vector<32x1xf32>
    %c0_34 = arith.constant 0 : index
    %c0_35 = arith.constant 0 : index
    %57 = vector.load %arg12[%c0_34, %c0_35] : memref<32x1xf32, #tpu.memory_space<vmem>>, vector<32x1xf32>
    tpu.vector_store %arg12[%c0_34, %c0_35], %56 {strides = array<i32>} : memref<32x1xf32, #tpu.memory_space<vmem>>, vector<32x1xf32>,
    return
  }
  func.func @transform_0(%arg0: i32) -> (i32, i32) {
    %c0_i32 = arith.constant 0 : i32
    %c0_i32_0 = arith.constant 0 : i32
    return %arg0, %c0_i32 : i32, i32
  }
  func.func @transform_1(%arg0: i32) -> (i32, i32) {
    %c0_i32 = arith.constant 0 : i32
    %c0_i32_0 = arith.constant 0 : i32
    return %arg0, %c0_i32 : i32, i32
  }
  func.func @transform_2(%arg0: i32) -> (i32, i32) {
    %c0_i32 = arith.constant 0 : i32
    %c0_i32_0 = arith.constant 0 : i32
    %c0_i32_1 = arith.constant 0 : i32
    return %c0_i32, %c0_i32_0 : i32, i32
  }
  func.func @transform_3(%arg0: i32) -> (i32, i32) {
    %c0_i32 = arith.constant 0 : i32
    %c0_i32_0 = arith.constant 0 : i32
    %c0_i32_1 = arith.constant 0 : i32
    return %c0_i32, %c0_i32_0 : i32, i32
  }
  func.func @transform_4(%arg0: i32) -> (i32, i32) {
    %c0_i32 = arith.constant 0 : i32
    %c0_i32_0 = arith.constant 0 : i32
    %c0_i32_1 = arith.constant 0 : i32
    return %c0_i32, %c0_i32_0 : i32, i32
  }
  func.func @transform_5(%arg0: i32) -> (i32, i32) {
    %c0_i32 = arith.constant 0 : i32
    %c0_i32_0 = arith.constant 0 : i32
    %c0_i32_1 = arith.constant 0 : i32
    return %c0_i32, %c0_i32_0 : i32, i32
  }
  func.func @transform_6(%arg0: i32) -> (i32, i32) {
    %c0_i32 = arith.constant 0 : i32
    %c0_i32_0 = arith.constant 0 : i32
    %c0_i32_1 = arith.constant 0 : i32
    return %c0_i32, %c0_i32_0 : i32, i32
  }
  func.func @transform_7(%arg0: i32) -> (i32, i32) {
    %c0_i32 = arith.constant 0 : i32
    %c0_i32_0 = arith.constant 0 : i32
    %c0_i32_1 = arith.constant 0 : i32
    return %c0_i32, %c0_i32_0 : i32, i32
  }
  func.func @transform_8(%arg0: i32) -> (i32, i32) {
    %c0_i32 = arith.constant 0 : i32
    %c0_i32_0 = arith.constant 0 : i32
    %c0_i32_1 = arith.constant 0 : i32
    return %c0_i32, %c0_i32_0 : i32, i32
  }
  func.func @transform_9(%arg0: i32) -> (i32, i32) {
    %c0_i32 = arith.constant 0 : i32
    %c0_i32_0 = arith.constant 0 : i32
    %c0_i32_1 = arith.constant 0 : i32
    return %c0_i32, %c0_i32_0 : i32, i32
  }
  func.func @transform_10(%arg0: i32) -> (i32, i32) {
    %c0_i32 = arith.constant 0 : i32
    %c0_i32_0 = arith.constant 0 : i32
    %c0_i32_1 = arith.constant 0 : i32
    return %c0_i32, %c0_i32_0 : i32, i32
  }
  func.func @transform_11(%arg0: i32) -> (i32, i32) {
    %c0_i32 = arith.constant 0 : i32
    %c0_i32_0 = arith.constant 0 : i32
    return %arg0, %c0_i32 : i32, i32
  }
}

</mosaic_0001>

<llo_original>
// kernel: squeeze.1
$region0: #{squeeze.1}
  %s0 = inlined_call_operand.vmem [shape: f32[640], index: 0, kind: input, shape index: {}]
  %s1 = inlined_call_operand.vmem [shape: f32[64,10], index: 1, kind: output, shape index: {}]
  %v2 = vld [vmem:[%s0] sm:$0x1]
  %vm3 = vcmask 80896
  %4 = vst.msk [vmem:[%s1] sm:$0x1] %vm3, %v2
  %s5 = scalar_lea.vmem %s0, 1
  %v6 = vld [vmem:[%s5] sm:$0x1]
  %7 = vrot.lane.b32.xlu0 %v6, 126
  %v8 = vpop.permute.xlu0 %7
  %vm9 = vcmask 80896
  %s10 = scalar_lea.vmem %s1, 13
  %11 = vst.msk [vmem:[%s10] sm:$0x1] %vm9, %v8
  %s12 = scalar_lea.vmem %s0, 2
  %v13 = vld [vmem:[%s12] sm:$0x1]
  %14 = vrot.lane.b32.xlu0 %v13, 124
  %v15 = vpop.permute.xlu0 %14
  %vm16 = vcmask 80896
  %s17 = scalar_lea.vmem %s1, 26
  %18 = vst.msk [vmem:[%s17] sm:$0x1] %vm16, %v15
  %s19 = scalar_lea.vmem %s0, 3
  %v20 = vld [vmem:[%s19] sm:$0x1]
  %21 = vrot.lane.b32.xlu0 %v20, 122
  %v22 = vpop.permute.xlu0 %21
  %vm23 = vcmask 80896
  %s24 = scalar_lea.vmem %s1, 39
  %25 = vst.msk [vmem:[%s24] sm:$0x1] %vm23, %v22
  %s26 = scalar_lea.vmem %s0, 4
  %v27 = vld [vmem:[%s26] sm:$0x1]
  %28 = vrot.lane.b32.xlu0 %v27, 120
  %v29 = vpop.permute.xlu0 %28
  %vm30 = vcmask 80896
  %s31 = scalar_lea.vmem %s1, 52
  %32 = vst.msk [vmem:[%s31] sm:$0x1] %vm30, %v29
  %v33 = vld [vmem:[%s0] sm:$0x1]
  %34 = vrot.lane.b32.xlu0 %v33, 118
  %v35 = vpop.permute.xlu0 %34
  %vm36 = vcmask 80896
  %s37 = scalar_lea.vmem %s1, 1
  %38 = vst.msk [vmem:[%s37] sm:$0x1] %vm36, %v35
  %s39 = scalar_lea.vmem %s0, 1
  %v40 = vld [vmem:[%s39] sm:$0x1]
  %41 = vrot.lane.b32.xlu0 %v40, 116
  %v42 = vpop.permute.xlu0 %41
  %vm43 = vcmask 80896
  %s44 = scalar_lea.vmem %s1, 14
  %45 = vst.msk [vmem:[%s44] sm:$0x1] %vm43, %v42
  %s46 = scalar_lea.vmem %s0, 2
  %v47 = vld [vmem:[%s46] sm:$0x1]
  %48 = vrot.lane.b32.xlu0 %v47, 114
  %v49 = vpop.permute.xlu0 %48
  %vm50 = vcmask 80896
  %s51 = scalar_lea.vmem %s1, 27
  %52 = vst.msk [vmem:[%s51] sm:$0x1] %vm50, %v49
  %s53 = scalar_lea.vmem %s0, 3
  %v54 = vld [vmem:[%s53] sm:$0x1]
  %55 = vrot.lane.b32.xlu0 %v54, 112
  %v56 = vpop.permute.xlu0 %55
  %vm57 = vcmask 80896
  %s58 = scalar_lea.vmem %s1, 40
  %59 = vst.msk [vmem:[%s58] sm:$0x1] %vm57, %v56
  %s60 = scalar_lea.vmem %s0, 4
  %v61 = vld [vmem:[%s60] sm:$0x1]
  %62 = vrot.lane.b32.xlu0 %v61, 110
  %v63 = vpop.permute.xlu0 %62
  %vm64 = vcmask 80896
  %s65 = scalar_lea.vmem %s1, 53
  %66 = vst.msk [vmem:[%s65] sm:$0x1] %vm64, %v63
  %v67 = vld [vmem:[%s0] sm:$0x1]
  %68 = vrot.lane.b32.xlu0 %v67, 108
  %v69 = vpop.permute.xlu0 %68
  %vm70 = vcmask 80896
  %s71 = scalar_lea.vmem %s1, 2
  %72 = vst.msk [vmem:[%s71] sm:$0x1] %vm70, %v69
  %s73 = scalar_lea.vmem %s0, 1
  %v74 = vld [vmem:[%s73] sm:$0x1]
  %75 = vrot.lane.b32.xlu0 %v74, 106
  %v76 = vpop.permute.xlu0 %75
  %vm77 = vcmask 80896
  %s78 = scalar_lea.vmem %s1, 15
  %79 = vst.msk [vmem:[%s78] sm:$0x1] %vm77, %v76
  %s80 = scalar_lea.vmem %s0, 2
  %v81 = vld [vmem:[%s80] sm:$0x1]
  %82 = vrot.lane.b32.xlu0 %v81, 104
  %v83 = vpop.permute.xlu0 %82
  %vm84 = vcmask 80896
  %s85 = scalar_lea.vmem %s1, 28
  %86 = vst.msk [vmem:[%s85] sm:$0x1] %vm84, %v83
  %s87 = scalar_lea.vmem %s0, 3
  %v88 = vld [vmem:[%s87] sm:$0x1]
  %89 = vrot.lane.b32.xlu0 %v88, 102
  %v90 = vpop.permute.xlu0 %89
  %vm91 = vcmask 80896
  %s92 = scalar_lea.vmem %s1, 41
  %93 = vst.msk [vmem:[%s92] sm:$0x1] %vm91, %v90
  %s94 = scalar_lea.vmem %s0, 4
  %v95 = vld [vmem:[%s94] sm:$0x1]
  %96 = vrot.lane.b32.xlu0 %v95, 100
  %v97 = vpop.permute.xlu0 %96
  %vm98 = vcmask 80896
  %s99 = scalar_lea.vmem %s1, 54
  %100 = vst.msk [vmem:[%s99] sm:$0x1] %vm98, %v97
  %v101 = vld [vmem:[%s0] sm:$0x1]
  %102 = vrot.lane.b32.xlu0 %v101, 98
  %v103 = vpop.permute.xlu0 %102
  %vm104 = vcmask 80896
  %s105 = scalar_lea.vmem %s1, 3
  %106 = vst.msk [vmem:[%s105] sm:$0x1] %vm104, %v103
  %s107 = scalar_lea.vmem %s0, 1
  %v108 = vld [vmem:[%s107] sm:$0x1]
  %109 = vrot.lane.b32.xlu0 %v108, 96
  %v110 = vpop.permute.xlu0 %109
  %vm111 = vcmask 80896
  %s112 = scalar_lea.vmem %s1, 16
  %113 = vst.msk [vmem:[%s112] sm:$0x1] %vm111, %v110
  %s114 = scalar_lea.vmem %s0, 2
  %v115 = vld [vmem:[%s114] sm:$0x1]
  %116 = vrot.lane.b32.xlu0 %v115, 94
  %v117 = vpop.permute.xlu0 %116
  %vm118 = vcmask 80896
  %s119 = scalar_lea.vmem %s1, 29
  %120 = vst.msk [vmem:[%s119] sm:$0x1] %vm118, %v117
  %s121 = scalar_lea.vmem %s0, 3
  %v122 = vld [vmem:[%s121] sm:$0x1]
  %123 = vrot.lane.b32.xlu0 %v122, 92
  %v124 = vpop.permute.xlu0 %123
  %vm125 = vcmask 80896
  %s126 = scalar_lea.vmem %s1, 42
  %127 = vst.msk [vmem:[%s126] sm:$0x1] %vm125, %v124
  %s128 = scalar_lea.vmem %s0, 4
  %v129 = vld [vmem:[%s128] sm:$0x1]
  %130 = vrot.lane.b32.xlu0 %v129, 90
  %v131 = vpop.permute.xlu0 %130
  %vm132 = vcmask 80896
  %s133 = scalar_lea.vmem %s1, 55
  %134 = vst.msk [vmem:[%s133] sm:$0x1] %vm132, %v131
  %v135 = vld [vmem:[%s0] sm:$0x1]
  %136 = vrot.lane.b32.xlu0 %v135, 88
  %v137 = vpop.permute.xlu0 %136
  %vm138 = vcmask 80896
  %s139 = scalar_lea.vmem %s1, 4
  %140 = vst.msk [vmem:[%s139] sm:$0x1] %vm138, %v137
  %s141 = scalar_lea.vmem %s0, 1
  %v142 = vld [vmem:[%s141] sm:$0x1]
  %143 = vrot.lane.b32.xlu0 %v142, 86
  %v144 = vpop.permute.xlu0 %143
  %vm145 = vcmask 80896
  %s146 = scalar_lea.vmem %s1, 17
  %147 = vst.msk [vmem:[%s146] sm:$0x1] %vm145, %v144
  %s148 = scalar_lea.vmem %s0, 2
  %v149 = vld [vmem:[%s148] sm:$0x1]
  %150 = vrot.lane.b32.xlu0 %v149, 84
  %v151 = vpop.permute.xlu0 %150
  %vm152 = vcmask 80896
  %s153 = scalar_lea.vmem %s1, 30
  %154 = vst.msk [vmem:[%s153] sm:$0x1] %vm152, %v151
  %s155 = scalar_lea.vmem %s0, 3
  %v156 = vld [vmem:[%s155] sm:$0x1]
  %157 = vrot.lane.b32.xlu0 %v156, 82
  %v158 = vpop.permute.xlu0 %157
  %vm159 = vcmask 80896
  %s160 = scalar_lea.vmem %s1, 43
  %161 = vst.msk [vmem:[%s160] sm:$0x1] %vm159, %v158
  %s162 = scalar_lea.vmem %s0, 4
  %v163 = vld [vmem:[%s162] sm:$0x1]
  %164 = vrot.lane.b32.xlu0 %v163, 80
  %v165 = vpop.permute.xlu0 %164
  %vm166 = vcmask 80896
  %s167 = scalar_lea.vmem %s1, 56
  %168 = vst.msk [vmem:[%s167] sm:$0x1] %vm166, %v165
  %v169 = vld [vmem:[%s0] sm:$0x1]
  %170 = vrot.lane.b32.xlu0 %v169, 78
  %v171 = vpop.permute.xlu0 %170
  %vm172 = vcmask 80896
  %s173 = scalar_lea.vmem %s1, 5
  %174 = vst.msk [vmem:[%s173] sm:$0x1] %vm172, %v171
  %s175 = scalar_lea.vmem %s0, 1
  %v176 = vld [vmem:[%s175] sm:$0x1]
  %177 = vrot.lane.b32.xlu0 %v176, 76
  %v178 = vpop.permute.xlu0 %177
  %vm179 = vcmask 80896
  %s180 = scalar_lea.vmem %s1, 18
  %181 = vst.msk [vmem:[%s180] sm:$0x1] %vm179, %v178
  %s182 = scalar_lea.vmem %s0, 2
  %v183 = vld [vmem:[%s182] sm:$0x1]
  %184 = vrot.lane.b32.xlu0 %v183, 74
  %v185 = vpop.permute.xlu0 %184
  %vm186 = vcmask 80896
  %s187 = scalar_lea.vmem %s1, 31
  %188 = vst.msk [vmem:[%s187] sm:$0x1] %vm186, %v185
  %s189 = scalar_lea.vmem %s0, 3
  %v190 = vld [vmem:[%s189] sm:$0x1]
  %191 = vrot.lane.b32.xlu0 %v190, 72
  %v192 = vpop.permute.xlu0 %191
  %vm193 = vcmask 80896
  %s194 = scalar_lea.vmem %s1, 44
  %195 = vst.msk [vmem:[%s194] sm:$0x1] %vm193, %v192
  %s196 = scalar_lea.vmem %s0, 4
  %v197 = vld [vmem:[%s196] sm:$0x1]
  %198 = vrot.lane.b32.xlu0 %v197, 70
  %v199 = vpop.permute.xlu0 %198
  %vm200 = vcmask 80896
  %s201 = scalar_lea.vmem %s1, 57
  %202 = vst.msk [vmem:[%s201] sm:$0x1] %vm200, %v199
  %v203 = vld [vmem:[%s0] sm:$0x1]
  %204 = vrot.lane.b32.xlu0 %v203, 68
  %v205 = vpop.permute.xlu0 %204
  %vm206 = vcmask 80896
  %s207 = scalar_lea.vmem %s1, 6
  %208 = vst.msk [vmem:[%s207] sm:$0x1] %vm206, %v205
  %s209 = scalar_lea.vmem %s0, 1
  %v210 = vld [vmem:[%s209] sm:$0x1]
  %211 = vrot.lane.b32.xlu0 %v210, 66
  %v212 = vpop.permute.xlu0 %211
  %vm213 = vcmask 80896
  %s214 = scalar_lea.vmem %s1, 19
  %215 = vst.msk [vmem:[%s214] sm:$0x1] %vm213, %v212
  %s216 = scalar_lea.vmem %s0, 2
  %v217 = vld [vmem:[%s216] sm:$0x1]
  %218 = vrot.lane.b32.xlu0 %v217, 64
  %v219 = vpop.permute.xlu0 %218
  %vm220 = vcmask 80896
  %s221 = scalar_lea.vmem %s1, 32
  %222 = vst.msk [vmem:[%s221] sm:$0x1] %vm220, %v219
  %s223 = scalar_lea.vmem %s0, 3
  %v224 = vld [vmem:[%s223] sm:$0x1]
  %225 = vrot.lane.b32.xlu0 %v224, 62
  %v226 = vpop.permute.xlu0 %225
  %vm227 = vcmask 80896
  %s228 = scalar_lea.vmem %s1, 45
  %229 = vst.msk [vmem:[%s228] sm:$0x1] %vm227, %v226
  %s230 = scalar_lea.vmem %s0, 4
  %v231 = vld [vmem:[%s230] sm:$0x1]
  %232 = vrot.lane.b32.xlu0 %v231, 60
  %v233 = vpop.permute.xlu0 %232
  %vm234 = vcmask 80896
  %s235 = scalar_lea.vmem %s1, 58
  %236 = vst.msk [vmem:[%s235] sm:$0x1] %vm234, %v233
  %v237 = vld [vmem:[%s0] sm:$0x1]
  %238 = vrot.lane.b32.xlu0 %v237, 58
  %v239 = vpop.permute.xlu0 %238
  %vm240 = vcmask 80896
  %s241 = scalar_lea.vmem %s1, 7
  %242 = vst.msk [vmem:[%s241] sm:$0x1] %vm240, %v239
  %s243 = scalar_lea.vmem %s0, 1
  %v244 = vld [vmem:[%s243] sm:$0x1]
  %245 = vrot.lane.b32.xlu0 %v244, 56
  %v246 = vpop.permute.xlu0 %245
  %vm247 = vcmask 80896
  %s248 = scalar_lea.vmem %s1, 20
  %249 = vst.msk [vmem:[%s248] sm:$0x1] %vm247, %v246
  %s250 = scalar_lea.vmem %s0, 2
  %v251 = vld [vmem:[%s250] sm:$0x1]
  %252 = vrot.lane.b32.xlu0 %v251, 54
  %v253 = vpop.permute.xlu0 %252
  %vm254 = vcmask 80896
  %s255 = scalar_lea.vmem %s1, 33
  %256 = vst.msk [vmem:[%s255] sm:$0x1] %vm254, %v253
  %s257 = scalar_lea.vmem %s0, 3
  %v258 = vld [vmem:[%s257] sm:$0x1]
  %259 = vrot.lane.b32.xlu0 %v258, 52
  %v260 = vpop.permute.xlu0 %259
  %vm261 = vcmask 80896
  %s262 = scalar_lea.vmem %s1, 46
  %263 = vst.msk [vmem:[%s262] sm:$0x1] %vm261, %v260
  %s264 = scalar_lea.vmem %s0, 4
  %v265 = vld [vmem:[%s264] sm:$0x1]
  %266 = vrot.lane.b32.xlu0 %v265, 50
  %v267 = vpop.permute.xlu0 %266
  %vm268 = vcmask 80896
  %s269 = scalar_lea.vmem %s1, 59
  %270 = vst.msk [vmem:[%s269] sm:$0x1] %vm268, %v267
  %v271 = vld [vmem:[%s0] sm:$0x1]
  %272 = vrot.lane.b32.xlu0 %v271, 48
  %v273 = vpop.permute.xlu0 %272
  %vm274 = vcmask 80896
  %s275 = scalar_lea.vmem %s1, 8
  %276 = vst.msk [vmem:[%s275] sm:$0x1] %vm274, %v273
  %s277 = scalar_lea.vmem %s0, 1
  %v278 = vld [vmem:[%s277] sm:$0x1]
  %279 = vrot.lane.b32.xlu0 %v278, 46
  %v280 = vpop.permute.xlu0 %279
  %vm281 = vcmask 80896
  %s282 = scalar_lea.vmem %s1, 21
  %283 = vst.msk [vmem:[%s282] sm:$0x1] %vm281, %v280
  %s284 = scalar_lea.vmem %s0, 2
  %v285 = vld [vmem:[%s284] sm:$0x1]
  %286 = vrot.lane.b32.xlu0 %v285, 44
  %v287 = vpop.permute.xlu0 %286
  %vm288 = vcmask 80896
  %s289 = scalar_lea.vmem %s1, 34
  %290 = vst.msk [vmem:[%s289] sm:$0x1] %vm288, %v287
  %s291 = scalar_lea.vmem %s0, 3
  %v292 = vld [vmem:[%s291] sm:$0x1]
  %293 = vrot.lane.b32.xlu0 %v292, 42
  %v294 = vpop.permute.xlu0 %293
  %vm295 = vcmask 80896
  %s296 = scalar_lea.vmem %s1, 47
  %297 = vst.msk [vmem:[%s296] sm:$0x1] %vm295, %v294
  %s298 = scalar_lea.vmem %s0, 4
  %v299 = vld [vmem:[%s298] sm:$0x1]
  %300 = vrot.lane.b32.xlu0 %v299, 40
  %v301 = vpop.permute.xlu0 %300
  %vm302 = vcmask 80896
  %s303 = scalar_lea.vmem %s1, 60
  %304 = vst.msk [vmem:[%s303] sm:$0x1] %vm302, %v301
  %v305 = vld [vmem:[%s0] sm:$0x1]
  %306 = vrot.lane.b32.xlu0 %v305, 38
  %v307 = vpop.permute.xlu0 %306
  %vm308 = vcmask 80896
  %s309 = scalar_lea.vmem %s1, 9
  %310 = vst.msk [vmem:[%s309] sm:$0x1] %vm308, %v307
  %s311 = scalar_lea.vmem %s0, 1
  %v312 = vld [vmem:[%s311] sm:$0x1]
  %313 = vrot.lane.b32.xlu0 %v312, 36
  %v314 = vpop.permute.xlu0 %313
  %vm315 = vcmask 80896
  %s316 = scalar_lea.vmem %s1, 22
  %317 = vst.msk [vmem:[%s316] sm:$0x1] %vm315, %v314
  %s318 = scalar_lea.vmem %s0, 2
  %v319 = vld [vmem:[%s318] sm:$0x1]
  %320 = vrot.lane.b32.xlu0 %v319, 34
  %v321 = vpop.permute.xlu0 %320
  %vm322 = vcmask 80896
  %s323 = scalar_lea.vmem %s1, 35
  %324 = vst.msk [vmem:[%s323] sm:$0x1] %vm322, %v321
  %s325 = scalar_lea.vmem %s0, 3
  %v326 = vld [vmem:[%s325] sm:$0x1]
  %327 = vrot.lane.b32.xlu0 %v326, 32
  %v328 = vpop.permute.xlu0 %327
  %vm329 = vcmask 80896
  %s330 = scalar_lea.vmem %s1, 48
  %331 = vst.msk [vmem:[%s330] sm:$0x1] %vm329, %v328
  %s332 = scalar_lea.vmem %s0, 4
  %v333 = vld [vmem:[%s332] sm:$0x1]
  %334 = vrot.lane.b32.xlu0 %v333, 30
  %v335 = vpop.permute.xlu0 %334
  %vm336 = vcmask 80896
  %s337 = scalar_lea.vmem %s1, 61
  %338 = vst.msk [vmem:[%s337] sm:$0x1] %vm336, %v335
  %v339 = vld [vmem:[%s0] sm:$0x1]
  %340 = vrot.lane.b32.xlu0 %v339, 28
  %v341 = vpop.permute.xlu0 %340
  %vm342 = vcmask 80896
  %s343 = scalar_lea.vmem %s1, 10
  %344 = vst.msk [vmem:[%s343] sm:$0x1] %vm342, %v341
  %s345 = scalar_lea.vmem %s0, 1
  %v346 = vld [vmem:[%s345] sm:$0x1]
  %347 = vrot.lane.b32.xlu0 %v346, 26
  %v348 = vpop.permute.xlu0 %347
  %vm349 = vcmask 80896
  %s350 = scalar_lea.vmem %s1, 23
  %351 = vst.msk [vmem:[%s350] sm:$0x1] %vm349, %v348
  %s352 = scalar_lea.vmem %s0, 2
  %v353 = vld [vmem:[%s352] sm:$0x1]
  %354 = vrot.lane.b32.xlu0 %v353, 24
  %v355 = vpop.permute.xlu0 %354
  %vm356 = vcmask 80896
  %s357 = scalar_lea.vmem %s1, 36
  %358 = vst.msk [vmem:[%s357] sm:$0x1] %vm356, %v355
  %s359 = scalar_lea.vmem %s0, 3
  %v360 = vld [vmem:[%s359] sm:$0x1]
  %361 = vrot.lane.b32.xlu0 %v360, 22
  %v362 = vpop.permute.xlu0 %361
  %vm363 = vcmask 80896
  %s364 = scalar_lea.vmem %s1, 49
  %365 = vst.msk [vmem:[%s364] sm:$0x1] %vm363, %v362
  %s366 = scalar_lea.vmem %s0, 4
  %v367 = vld [vmem:[%s366] sm:$0x1]
  %368 = vrot.lane.b32.xlu0 %v367, 20
  %v369 = vpop.permute.xlu0 %368
  %vm370 = vcmask 80896
  %s371 = scalar_lea.vmem %s1, 62
  %372 = vst.msk [vmem:[%s371] sm:$0x1] %vm370, %v369
  %v373 = vld [vmem:[%s0] sm:$0x1]
  %374 = vrot.lane.b32.xlu0 %v373, 18
  %v375 = vpop.permute.xlu0 %374
  %vm376 = vcmask 80896
  %s377 = scalar_lea.vmem %s1, 11
  %378 = vst.msk [vmem:[%s377] sm:$0x1] %vm376, %v375
  %s379 = scalar_lea.vmem %s0, 1
  %v380 = vld [vmem:[%s379] sm:$0x1]
  %381 = vrot.lane.b32.xlu0 %v380, 16
  %v382 = vpop.permute.xlu0 %381
  %vm383 = vcmask 80896
  %s384 = scalar_lea.vmem %s1, 24
  %385 = vst.msk [vmem:[%s384] sm:$0x1] %vm383, %v382
  %s386 = scalar_lea.vmem %s0, 2
  %v387 = vld [vmem:[%s386] sm:$0x1]
  %388 = vrot.lane.b32.xlu0 %v387, 14
  %v389 = vpop.permute.xlu0 %388
  %vm390 = vcmask 80896
  %s391 = scalar_lea.vmem %s1, 37
  %392 = vst.msk [vmem:[%s391] sm:$0x1] %vm390, %v389
  %s393 = scalar_lea.vmem %s0, 3
  %v394 = vld [vmem:[%s393] sm:$0x1]
  %395 = vrot.lane.b32.xlu0 %v394, 12
  %v396 = vpop.permute.xlu0 %395
  %vm397 = vcmask 80896
  %s398 = scalar_lea.vmem %s1, 50
  %399 = vst.msk [vmem:[%s398] sm:$0x1] %vm397, %v396
  %s400 = scalar_lea.vmem %s0, 4
  %v401 = vld [vmem:[%s400] sm:$0x1]
  %402 = vrot.lane.b32.xlu0 %v401, 10
  %v403 = vpop.permute.xlu0 %402
  %vm404 = vcmask 80896
  %s405 = scalar_lea.vmem %s1, 63
  %406 = vst.msk [vmem:[%s405] sm:$0x1] %vm404, %v403
  %v407 = vld [vmem:[%s0] sm:$0x1]
  %s408 = scalar_lea.vmem %s0, 1
  %v409 = vld [vmem:[%s408] sm:$0x1]
  %vm410 = vcmask 982016
  %v411 = vsel %vm410, %v409, %v407
  %412 = vrot.lane.b32.xlu0 %v411, 8
  %v413 = vpop.permute.xlu0 %412
  %vm414 = vcmask 64512
  %s415 = scalar_lea.vmem %s1, 12
  %416 = vst.msk [vmem:[%s415] sm:$0x1] %vm414, %v413
  %vm417 = vcmask 80960
  %s418 = scalar_lea.vmem %s1, 12
  %419 = vst.msk [vmem:[%s418] sm:$0x1] %vm417, %v413
  %s420 = scalar_lea.vmem %s0, 1
  %v421 = vld [vmem:[%s420] sm:$0x1]
  %s422 = scalar_lea.vmem %s0, 2
  %v423 = vld [vmem:[%s422] sm:$0x1]
  %vm424 = vcmask 998400
  %v425 = vsel %vm424, %v423, %v421
  %426 = vrot.lane.b32.xlu0 %v425, 6
  %v427 = vpop.permute.xlu0 %426
  %vm428 = vcmask 48128
  %s429 = scalar_lea.vmem %s1, 25
  %430 = vst.msk [vmem:[%s429] sm:$0x1] %vm428, %v427
  %vm431 = vcmask 80944
  %s432 = scalar_lea.vmem %s1, 25
  %433 = vst.msk [vmem:[%s432] sm:$0x1] %vm431, %v427
  %s434 = scalar_lea.vmem %s0, 2
  %v435 = vld [vmem:[%s434] sm:$0x1]
  %s436 = scalar_lea.vmem %s0, 3
  %v437 = vld [vmem:[%s436] sm:$0x1]
  %vm438 = vcmask 1014784
  %v439 = vsel %vm438, %v437, %v435
  %440 = vrot.lane.b32.xlu0 %v439, 4
  %v441 = vpop.permute.xlu0 %440
  %vm442 = vcmask 31744
  %s443 = scalar_lea.vmem %s1, 38
  %444 = vst.msk [vmem:[%s443] sm:$0x1] %vm442, %v441
  %vm445 = vcmask 80928
  %s446 = scalar_lea.vmem %s1, 38
  %447 = vst.msk [vmem:[%s446] sm:$0x1] %vm445, %v441
  %s448 = scalar_lea.vmem %s0, 3
  %v449 = vld [vmem:[%s448] sm:$0x1]
  %s450 = scalar_lea.vmem %s0, 4
  %v451 = vld [vmem:[%s450] sm:$0x1]
  %vm452 = vcmask 1031168
  %v453 = vsel %vm452, %v451, %v449
  %454 = vrot.lane.b32.xlu0 %v453, 2
  %v455 = vpop.permute.xlu0 %454
  %vm456 = vcmask 15360
  %s457 = scalar_lea.vmem %s1, 51
  %458 = vst.msk [vmem:[%s457] sm:$0x1] %vm456, %v455
  %vm459 = vcmask 80912
  %s460 = scalar_lea.vmem %s1, 51
  %461 = vst.msk [vmem:[%s460] sm:$0x1] %vm459, %v455

// kernel: _lambda_.1
$region0: #{_lambda_.1}
  #allocation0 [shape = 'u32[]', space=smem, size = 0x4, offset = 0x4, fixed_abs, tag = 'smem constant byte address 0x4 - core index']
  #allocation1 [shape = 'u32[144,128]{1,0:T(1,128)}', space=vmem, size = 0x12000, scoped, tag = 'internal scratch']
  #allocation2 [shape = 'f32[1,1]{1,0:T(1,128)S(6)}', space=smem, size = 0x200, scoped, tag = 'scoped memory for _lambda_.1']
  %s0 = inlined_call_operand.vmem [shape: bf16[64,160], index: 0, kind: input, shape index: {}]
  %s1 = inlined_call_operand.vmem [shape: f32[64,10], index: 1, kind: input, shape index: {}]
  %s2 = inlined_call_operand.vmem [shape: bf16[160,128], index: 2, kind: input, shape index: {}]
  %s3 = inlined_call_operand.vmem [shape: f32[1,128], index: 3, kind: input, shape index: {}, may-alias: {3,5}]
  %s4 = inlined_call_operand.vmem [shape: bf16[128,128], index: 4, kind: input, shape index: {}]
  %s5 = inlined_call_operand.vmem [shape: f32[1,128], index: 5, kind: input, shape index: {}, may-alias: {3,5}]
  %s6 = inlined_call_operand.vmem [shape: bf16[128,10], index: 6, kind: input, shape index: {}]
  %s7 = inlined_call_operand.vmem [shape: f32[1,10], index: 7, kind: input, shape index: {}]
  %s8 = inlined_call_operand.vmem [shape: f32[10,160], index: 8, kind: input, shape index: {}]
  %s9 = inlined_call_operand.vmem [shape: f32[160,16], index: 9, kind: input, shape index: {}]
  %s10 = inlined_call_operand.<no memory space> [shape: f32[1,1], index: 10, kind: input, shape index: {}]
  %s11 = inlined_call_operand.vmem [shape: f32[64,1], index: 11, kind: output, shape index: {}]
  %s12 = sld [smem:[#allocation0]]
  $region77: #{_lambda_.1} parent=0
    _
  %s14 = ssub.s32 1, %s12
  %s15 = scalar_select 0, %s14, %s12
  %16 = sst [smem:[#allocation2]] %s10
  loop: start=0, step=1, limit=4
  $region2: #{_lambda_.1} parent=0 // loop_pre_header
    _
  $region3: #{_lambda_.1} parent=0 // loop_header
    %s18 = sphi 0, %s22
    %p19 = scmp.ge.s32.totalorder %s18, 4
    %s28 = sphi 0, %s30
    %s31 = sphi 0, %s28
    %s32 = sphi 0, %s31
    %s48 = sphi 0, %s32
    %s54 = sphi 0, %s56
    %s57 = sphi 0, %s54
    %s58 = sphi 0, %s57
    %s74 = sphi 0, %s58
    %s78 = sphi 0, %s78
    %s80 = sphi 0, %s78
    %s81 = sphi 0, %s80
    %s95 = sphi 0, %s81
    %s99 = sphi 0, %s99
    %s101 = sphi 0, %s99
    %s102 = sphi 0, %s101
    %s116 = sphi 0, %s102
    %s120 = sphi 0, %s120
    %s122 = sphi 0, %s120
    %s123 = sphi 0, %s122
    %s137 = sphi 0, %s123
    %s141 = sphi 0, %s141
    %s143 = sphi 0, %s141
    %s144 = sphi 0, %s143
    %s158 = sphi 0, %s144
    %s162 = sphi 0, %s162
    %s164 = sphi 0, %s162
    %s165 = sphi 0, %s164
    %s179 = sphi 0, %s165
    %s183 = sphi 0, %s183
    %s185 = sphi 0, %s183
    %s186 = sphi 0, %s185
    %s200 = sphi 0, %s186
    %s204 = sphi 0, %s204
    %s206 = sphi 0, %s204
    %s207 = sphi 0, %s206
    %s221 = sphi 0, %s207
    %s225 = sphi 0, %s225
    %s227 = sphi 0, %s225
    %s228 = sphi 0, %s227
    %s242 = sphi 0, %s228
    %s246 = sphi 0, %s246
    %s248 = sphi 0, %s246
    %s249 = sphi 0, %s248
    %s263 = sphi 0, %s249
    %s269 = sphi 0, %s271
    %s272 = sphi 0, %s269
    %s273 = sphi 0, %s272
    %s289 = sphi 0, %s273
  $region4: #{_lambda_.1} parent=0 // loop_header_branch
    %21 = sbr.rel (%p19) target = $region8
  $region5: #{_lambda_.1} parent=0 // loop_body
    %s23 = ssub.s32 %s18, 1
    %s24 = ssub.s32 %s18, 2
    %s25 = sadd.s32 %s18, 1
    %s26 = ssub.s32 %s18, %s25
    %p27 = scmp.eq.s32.totalorder %s26, 0
    %s29 = sadd.s32 %s28, 1
    %s30 = scalar_select %p27, %s28, %s29
    %p33 = pneg %p27
    %p34 = scmp.eq.s32.totalorder %s18, 1
    %p35 = por %p33, %p34
    %p36 = scmp.ne.s32.totalorder %s28, %s31
    %p37 = scmp.eq.s32.totalorder %s18, 0
    %p38 = por %p36, %p37
    %p39 = scmp.ne.s32.totalorder %s28, %s31
    %p40 = scmp.eq.s32.totalorder %s23, 1
    %p41 = por %p39, %p40
    %p42 = scmp.ne.s32.totalorder %s31, %s32
    %p43 = scmp.eq.s32.totalorder %s23, 0
    %p44 = por %p42, %p43
    %p45 = scmp.ne.s32.totalorder %s31, %s32
    %p46 = scmp.eq.s32.totalorder %s24, 1
    %p47 = por %p45, %p46
    %p49 = scmp.ne.s32.totalorder %s32, %s48
    %p50 = scmp.eq.s32.totalorder %s24, 0
    %p51 = por %p49, %p50
    %s52 = ssub.s32 %s18, %s25
    %p53 = scmp.eq.s32.totalorder %s52, 0
    %s55 = sadd.s32 %s54, 1
    %s56 = scalar_select %p53, %s54, %s55
    %p59 = pneg %p53
    %p60 = scmp.eq.s32.totalorder %s18, 1
    %p61 = por %p59, %p60
    %p62 = scmp.ne.s32.totalorder %s54, %s57
    %p63 = scmp.eq.s32.totalorder %s18, 0
    %p64 = por %p62, %p63
    %p65 = scmp.ne.s32.totalorder %s54, %s57
    %p66 = scmp.eq.s32.totalorder %s23, 1
    %p67 = por %p65, %p66
    %p68 = scmp.ne.s32.totalorder %s57, %s58
    %p69 = scmp.eq.s32.totalorder %s23, 0
    %p70 = por %p68, %p69
    %p71 = scmp.ne.s32.totalorder %s57, %s58
    %p72 = scmp.eq.s32.totalorder %s24, 1
    %p73 = por %p71, %p72
    %p75 = scmp.ne.s32.totalorder %s58, %s74
    %p76 = scmp.eq.s32.totalorder %s24, 0
    %p77 = por %p75, %p76
    %s79 = sadd.s32 %s78, 1
    %p82 = scmp.eq.s32.totalorder %s18, 1
    %p83 = scmp.ne.s32.totalorder %s78, %s80
    %p84 = scmp.eq.s32.totalorder %s18, 0
    %p85 = por %p83, %p84
    %p86 = scmp.ne.s32.totalorder %s78, %s80
    %p87 = scmp.eq.s32.totalorder %s23, 1
    %p88 = por %p86, %p87
    %p89 = scmp.ne.s32.totalorder %s80, %s81
    %p90 = scmp.eq.s32.totalorder %s23, 0
    %p91 = por %p89, %p90
    %p92 = scmp.ne.s32.totalorder %s80, %s81
    %p93 = scmp.eq.s32.totalorder %s24, 1
    %p94 = por %p92, %p93
    %p96 = scmp.ne.s32.totalorder %s81, %s95
    %p97 = scmp.eq.s32.totalorder %s24, 0
    %p98 = por %p96, %p97
    %s100 = sadd.s32 %s99, 1
    %p103 = scmp.eq.s32.totalorder %s18, 1
    %p104 = scmp.ne.s32.totalorder %s99, %s101
    %p105 = scmp.eq.s32.totalorder %s18, 0
    %p106 = por %p104, %p105
    %p107 = scmp.ne.s32.totalorder %s99, %s101
    %p108 = scmp.eq.s32.totalorder %s23, 1
    %p109 = por %p107, %p108
    %p110 = scmp.ne.s32.totalorder %s101, %s102
    %p111 = scmp.eq.s32.totalorder %s23, 0
    %p112 = por %p110, %p111
    %p113 = scmp.ne.s32.totalorder %s101, %s102
    %p114 = scmp.eq.s32.totalorder %s24, 1
    %p115 = por %p113, %p114
    %p117 = scmp.ne.s32.totalorder %s102, %s116
    %p118 = scmp.eq.s32.totalorder %s24, 0
    %p119 = por %p117, %p118
    %s121 = sadd.s32 %s120, 1
    %p124 = scmp.eq.s32.totalorder %s18, 1
    %p125 = scmp.ne.s32.totalorder %s120, %s122
    %p126 = scmp.eq.s32.totalorder %s18, 0
    %p127 = por %p125, %p126
    %p128 = scmp.ne.s32.totalorder %s120, %s122
    %p129 = scmp.eq.s32.totalorder %s23, 1
    %p130 = por %p128, %p129
    %p131 = scmp.ne.s32.totalorder %s122, %s123
    %p132 = scmp.eq.s32.totalorder %s23, 0
    %p133 = por %p131, %p132
    %p134 = scmp.ne.s32.totalorder %s122, %s123
    %p135 = scmp.eq.s32.totalorder %s24, 1
    %p136 = por %p134, %p135
    %p138 = scmp.ne.s32.totalorder %s123, %s137
    %p139 = scmp.eq.s32.totalorder %s24, 0
    %p140 = por %p138, %p139
    %s142 = sadd.s32 %s141, 1
    %p145 = scmp.eq.s32.totalorder %s18, 1
    %p146 = scmp.ne.s32.totalorder %s141, %s143
    %p147 = scmp.eq.s32.totalorder %s18, 0
    %p148 = por %p146, %p147
    %p149 = scmp.ne.s32.totalorder %s141, %s143
    %p150 = scmp.eq.s32.totalorder %s23, 1
    %p151 = por %p149, %p150
    %p152 = scmp.ne.s32.totalorder %s143, %s144
    %p153 = scmp.eq.s32.totalorder %s23, 0
    %p154 = por %p152, %p153
    %p155 = scmp.ne.s32.totalorder %s143, %s144
    %p156 = scmp.eq.s32.totalorder %s24, 1
    %p157 = por %p155, %p156
    %p159 = scmp.ne.s32.totalorder %s144, %s158
    %p160 = scmp.eq.s32.totalorder %s24, 0
    %p161 = por %p159, %p160
    %s163 = sadd.s32 %s162, 1
    %p166 = scmp.eq.s32.totalorder %s18, 1
    %p167 = scmp.ne.s32.totalorder %s162, %s164
    %p168 = scmp.eq.s32.totalorder %s18, 0
    %p169 = por %p167, %p168
    %p170 = scmp.ne.s32.totalorder %s162, %s164
    %p171 = scmp.eq.s32.totalorder %s23, 1
    %p172 = por %p170, %p171
    %p173 = scmp.ne.s32.totalorder %s164, %s165
    %p174 = scmp.eq.s32.totalorder %s23, 0
    %p175 = por %p173, %p174
    %p176 = scmp.ne.s32.totalorder %s164, %s165
    %p177 = scmp.eq.s32.totalorder %s24, 1
    %p178 = por %p176, %p177
    %p180 = scmp.ne.s32.totalorder %s165, %s179
    %p181 = scmp.eq.s32.totalorder %s24, 0
    %p182 = por %p180, %p181
    %s184 = sadd.s32 %s183, 1
    %p187 = scmp.eq.s32.totalorder %s18, 1
    %p188 = scmp.ne.s32.totalorder %s183, %s185
    %p189 = scmp.eq.s32.totalorder %s18, 0
    %p190 = por %p188, %p189
    %p191 = scmp.ne.s32.totalorder %s183, %s185
    %p192 = scmp.eq.s32.totalorder %s23, 1
    %p193 = por %p191, %p192
    %p194 = scmp.ne.s32.totalorder %s185, %s186
    %p195 = scmp.eq.s32.totalorder %s23, 0
    %p196 = por %p194, %p195
    %p197 = scmp.ne.s32.totalorder %s185, %s186
    %p198 = scmp.eq.s32.totalorder %s24, 1
    %p199 = por %p197, %p198
    %p201 = scmp.ne.s32.totalorder %s186, %s200
    %p202 = scmp.eq.s32.totalorder %s24, 0
    %p203 = por %p201, %p202
    %s205 = sadd.s32 %s204, 1
    %p208 = scmp.eq.s32.totalorder %s18, 1
    %p209 = scmp.ne.s32.totalorder %s204, %s206
    %p210 = scmp.eq.s32.totalorder %s18, 0
    %p211 = por %p209, %p210
    %p212 = scmp.ne.s32.totalorder %s204, %s206
    %p213 = scmp.eq.s32.totalorder %s23, 1
    %p214 = por %p212, %p213
    %p215 = scmp.ne.s32.totalorder %s206, %s207
    %p216 = scmp.eq.s32.totalorder %s23, 0
    %p217 = por %p215, %p216
    %p218 = scmp.ne.s32.totalorder %s206, %s207
    %p219 = scmp.eq.s32.totalorder %s24, 1
    %p220 = por %p218, %p219
    %p222 = scmp.ne.s32.totalorder %s207, %s221
    %p223 = scmp.eq.s32.totalorder %s24, 0
    %p224 = por %p222, %p223
    %s226 = sadd.s32 %s225, 1
    %p229 = scmp.eq.s32.totalorder %s18, 1
    %p230 = scmp.ne.s32.totalorder %s225, %s227
    %p231 = scmp.eq.s32.totalorder %s18, 0
    %p232 = por %p230, %p231
    %p233 = scmp.ne.s32.totalorder %s225, %s227
    %p234 = scmp.eq.s32.totalorder %s23, 1
    %p235 = por %p233, %p234
    %p236 = scmp.ne.s32.totalorder %s227, %s228
    %p237 = scmp.eq.s32.totalorder %s23, 0
    %p238 = por %p236, %p237
    %p239 = scmp.ne.s32.totalorder %s227, %s228
    %p240 = scmp.eq.s32.totalorder %s24, 1
    %p241 = por %p239, %p240
    %p243 = scmp.ne.s32.totalorder %s228, %s242
    %p244 = scmp.eq.s32.totalorder %s24, 0
    %p245 = por %p243, %p244
    %s247 = sadd.s32 %s246, 1
    %p250 = scmp.eq.s32.totalorder %s18, 1
    %p251 = scmp.ne.s32.totalorder %s246, %s248
    %p252 = scmp.eq.s32.totalorder %s18, 0
    %p253 = por %p251, %p252
    %p254 = scmp.ne.s32.totalorder %s246, %s248
    %p255 = scmp.eq.s32.totalorder %s23, 1
    %p256 = por %p254, %p255
    %p257 = scmp.ne.s32.totalorder %s248, %s249
    %p258 = scmp.eq.s32.totalorder %s23, 0
    %p259 = por %p257, %p258
    %p260 = scmp.ne.s32.totalorder %s248, %s249
    %p261 = scmp.eq.s32.totalorder %s24, 1
    %p262 = por %p260, %p261
    %p264 = scmp.ne.s32.totalorder %s249, %s263
    %p265 = scmp.eq.s32.totalorder %s24, 0
    %p266 = por %p264, %p265
    %s267 = ssub.s32 %s18, %s25
    %p268 = scmp.eq.s32.totalorder %s267, 0
    %s270 = sadd.s32 %s269, 1
    %s271 = scalar_select %p268, %s269, %s270
    %p274 = pneg %p268
    %p275 = scmp.eq.s32.totalorder %s18, 1
    %p276 = por %p274, %p275
    %p277 = scmp.ne.s32.totalorder %s269, %s272
    %p278 = scmp.eq.s32.totalorder %s18, 0
    %p279 = por %p277, %p278
    %p280 = scmp.ne.s32.totalorder %s269, %s272
    %p281 = scmp.eq.s32.totalorder %s23, 1
    %p282 = por %p280, %p281
    %p283 = scmp.ne.s32.totalorder %s272, %s273
    %p284 = scmp.eq.s32.totalorder %s23, 0
    %p285 = por %p283, %p284
    %p286 = scmp.ne.s32.totalorder %s272, %s273
    %p287 = scmp.eq.s32.totalorder %s24, 1
    %p288 = por %p286, %p287
    %p290 = scmp.ne.s32.totalorder %s273, %s289
    %p291 = scmp.eq.s32.totalorder %s24, 0
    %p292 = por %p290, %p291
    %p293 = scmp.le.s32.totalorder 1, %s18
    %p294 = scmp.lt.s32.totalorder %s18, 3
    %p295 = pnand %p293, %p294
    %p296 = pneg %p295
    // Predicated region
    $region9: #{_lambda_.1} parent=5 // pred_check
      _
    $region10: #{_lambda_.1} parent=5 // pred_check_branch
      %298 = sbr.rel (%p295) target = $region12
    $region11: #{_lambda_.1} parent=5 // pred_region
      %s299 = ssub.s32 %s18, 1
      // Predicated region
      $region13: #{_lambda_.1} parent=11 // pred_check
        %p300 = pneg %p91
      $region14: #{_lambda_.1} parent=11 // pred_check_branch
        %302 = sbr.rel (%p300) target = $region16
      $region15: #{_lambda_.1} parent=11 // pred_region
        _
      $region16: #{_lambda_.1} parent=11 // pred_fallthru
        _
      // Predicated region
      $region17: #{_lambda_.1} parent=11 // pred_check
        %p303 = pneg %p112
      $region18: #{_lambda_.1} parent=11 // pred_check_branch
        %305 = sbr.rel (%p303) target = $region20
      $region19: #{_lambda_.1} parent=11 // pred_region
        _
      $region20: #{_lambda_.1} parent=11 // pred_fallthru
        _
      // Predicated region
      $region21: #{_lambda_.1} parent=11 // pred_check
        %p306 = pneg %p133
      $region22: #{_lambda_.1} parent=11 // pred_check_branch
        %308 = sbr.rel (%p306) target = $region24
      $region23: #{_lambda_.1} parent=11 // pred_region
        _
      $region24: #{_lambda_.1} parent=11 // pred_fallthru
        _
      // Predicated region
      $region25: #{_lambda_.1} parent=11 // pred_check
        %p309 = pneg %p154
      $region26: #{_lambda_.1} parent=11 // pred_check_branch
        %311 = sbr.rel (%p309) target = $region28
      $region27: #{_lambda_.1} parent=11 // pred_region
        _
      $region28: #{_lambda_.1} parent=11 // pred_fallthru
        _
      // Predicated region
      $region29: #{_lambda_.1} parent=11 // pred_check
        %p312 = pneg %p175
      $region30: #{_lambda_.1} parent=11 // pred_check_branch
        %314 = sbr.rel (%p312) target = $region32
      $region31: #{_lambda_.1} parent=11 // pred_region
        _
      $region32: #{_lambda_.1} parent=11 // pred_fallthru
        _
      // Predicated region
      $region33: #{_lambda_.1} parent=11 // pred_check
        %p315 = pneg %p196
      $region34: #{_lambda_.1} parent=11 // pred_check_branch
        %317 = sbr.rel (%p315) target = $region36
      $region35: #{_lambda_.1} parent=11 // pred_region
        _
      $region36: #{_lambda_.1} parent=11 // pred_fallthru
        _
      // Predicated region
      $region37: #{_lambda_.1} parent=11 // pred_check
        %p318 = pneg %p217
      $region38: #{_lambda_.1} parent=11 // pred_check_branch
        %320 = sbr.rel (%p318) target = $region40
      $region39: #{_lambda_.1} parent=11 // pred_region
        _
      $region40: #{_lambda_.1} parent=11 // pred_fallthru
        _
      // Predicated region
      $region41: #{_lambda_.1} parent=11 // pred_check
        %p321 = pneg %p238
      $region42: #{_lambda_.1} parent=11 // pred_check_branch
        %323 = sbr.rel (%p321) target = $region44
      $region43: #{_lambda_.1} parent=11 // pred_region
        _
      $region44: #{_lambda_.1} parent=11 // pred_fallthru
        _
      // Predicated region
      $region45: #{_lambda_.1} parent=11 // pred_check
        %p324 = pneg %p259
      $region46: #{_lambda_.1} parent=11 // pred_check_branch
        %326 = sbr.rel (%p324) target = $region48
      $region47: #{_lambda_.1} parent=11 // pred_region
        _
      $region48: #{_lambda_.1} parent=11 // pred_fallthru
        _
    $region12: #{_lambda_.1} parent=5 // pred_fallthru
      _
    %p327 = scmp.lt.s32.totalorder %s18, 2
    // Predicated region
    $region49: #{_lambda_.1} parent=5 // pred_check
      %p328 = pneg %p327
    $region50: #{_lambda_.1} parent=5 // pred_check_branch
      %330 = sbr.rel (%p328) target = $region52
    $region51: #{_lambda_.1} parent=5 // pred_region
      // Predicated region
      $region53: #{_lambda_.1} parent=51 // pred_check
        %p331 = pneg %p38
      $region54: #{_lambda_.1} parent=51 // pred_check_branch
        %333 = sbr.rel (%p331) target = $region56
      $region55: #{_lambda_.1} parent=51 // pred_region
        %s334 = smul.u32 4, %s18
        %p335 = scmp.lt.s32.totalorder %s334, 7
        %s336 = scalar_select %p335, %s334, 7
        %s337 = smul.addr %s336, 2
        %s338 = smul.addr %s337, 4
        %s339 = scalar_lea.vmem %s0, %s338
        %s340 = smul.u32 4, %s18
      $region56: #{_lambda_.1} parent=51 // pred_fallthru
        _
      // Predicated region
      $region57: #{_lambda_.1} parent=51 // pred_check
        %p341 = pneg %p64
      $region58: #{_lambda_.1} parent=51 // pred_check_branch
        %343 = sbr.rel (%p341) target = $region60
      $region59: #{_lambda_.1} parent=51 // pred_region
        %s344 = smul.u32 4, %s18
        %p345 = scmp.lt.s32.totalorder %s344, 7
        %s346 = scalar_select %p345, %s344, 7
        %s347 = smul.addr %s346, 8
        %s348 = scalar_lea.vmem %s1, %s347
        %s349 = smul.u32 4, %s18
      $region60: #{_lambda_.1} parent=51 // pred_fallthru
        _
    $region52: #{_lambda_.1} parent=5 // pred_fallthru
      _
    %p350 = scmp.le.s32.totalorder 1, %s18
    %p351 = scmp.lt.s32.totalorder %s18, 3
    %p352 = pnand %p350, %p351
    %p353 = pneg %p352
    // Predicated region
    $region61: #{_lambda_.1} parent=5 // pred_check
      _
    $region62: #{_lambda_.1} parent=5 // pred_check_branch
      %355 = sbr.rel (%p352) target = $region64
    $region63: #{_lambda_.1} parent=5 // pred_region
      %s356 = ssub.s32 %s18, 1
      %s357 = smul.u32 4, %s23
      %p358 = scmp.lt.s32.totalorder %s357, 7
      %s359 = scalar_select %p358, %s357, 7
      %s360 = smul.addr %s359, 2
      %s361 = smul.addr %s360, 4
      %s362 = scalar_lea.vmem %s0, %s361
      %p363 = pneg %p44
      %p364 = pneg %p41
      %s365 = smul.u32 4, %s23
      %p366 = scmp.lt.s32.totalorder %s365, 7
      %s367 = scalar_select %p366, %s365, 7
      %s368 = smul.addr %s367, 8
      %s369 = scalar_lea.vmem %s1, %s368
      %p370 = pneg %p70
      %p371 = pneg %p67
      %p372 = pneg %p91
      %p373 = pneg %p88
      %p374 = pneg %p112
      %p375 = pneg %p109
      %p376 = pneg %p133
      %p377 = pneg %p130
      %p378 = pneg %p154
      %p379 = pneg %p151
      %p380 = pneg %p175
      %p381 = pneg %p172
      %p382 = pneg %p196
      %p383 = pneg %p193
      %p384 = pneg %p217
      %p385 = pneg %p214
      %p386 = pneg %p238
      %p387 = pneg %p235
      %p388 = pneg %p259
      %p389 = pneg %p256
      %p390 = pneg %p285
      %p391 = pneg %p282
      %s392 = smul.u32 4, %s23
      %p393 = scmp.lt.s32.totalorder %s392, 7
      %s394 = scalar_select %p393, %s392, 7
      %s395 = smul.addr %s394, 8
      %s396 = scalar_lea.vmem %s11, %s395
      %s397 = smul.u32 4, %s23
      %p398 = scmp.lt.s32.totalorder %s397, 7
      %s399 = scalar_select %p398, %s397, 7
      %s400 = smul.addr %s399, 2
      %s401 = smul.addr %s400, 4
      %s402 = scalar_lea.vmem %s0, %s401
      %s403 = smul.u32 4, %s23
      %s404 = smul.u32 4, %s23
      %p405 = scmp.lt.s32.totalorder %s404, 7
      %s406 = scalar_select %p405, %s404, 7
      %s407 = smul.addr %s406, 8
      %s408 = scalar_lea.vmem %s1, %s407
      %s409 = smul.u32 4, %s23
      %s410 = smul.u32 4, %s23
      %p411 = scmp.lt.s32.totalorder %s410, 7
      %s412 = scalar_select %p411, %s410, 7
      %s413 = smul.addr %s412, 8
      %s414 = scalar_lea.vmem %s11, %s413
      %s415 = smul.u32 4, %s23
      %v417 = vld [vmem:[%s402] sm:$0xff]
      %v418 = vld [vmem:[%s402 + $0x8] sm:$0xff]
      %v419 = vld [vmem:[%s402 + $0x10] sm:$0xff]
      %v420 = vld [vmem:[%s402 + $0x18] sm:$0xff]
      %v421 = vunpack.c.l.bf16 %v417
      %v422 = vunpack.c.h.bf16 %v417
      %v423 = vunpack.c.l.bf16 %v418
      %v424 = vunpack.c.h.bf16 %v418
      %v425 = vunpack.c.l.bf16 %v419
      %v426 = vunpack.c.h.bf16 %v419
      %v427 = vunpack.c.l.bf16 %v420
      %v428 = vunpack.c.h.bf16 %v420
      %v429 = vld [vmem:[%s2] sm:$0xf]
      %v430 = vld [vmem:[%s2 + $0x4] sm:$0xf]
      %v431 = vld [vmem:[%s2 + $0x8] sm:$0xf]
      %v432 = vld [vmem:[%s2 + $0xc] sm:$0xf]
      %v433 = vld [vmem:[%s2 + $0x10] sm:$0xf]
      %v434 = vld [vmem:[%s2 + $0x14] sm:$0xf]
      %v435 = vld [vmem:[%s2 + $0x18] sm:$0xf]
      %v436 = vld [vmem:[%s2 + $0x1c] sm:$0xf]
      %v437 = vld [vmem:[%s2 + $0x20] sm:$0xf]
      %v438 = vld [vmem:[%s2 + $0x24] sm:$0xf]
      %v439 = vld [vmem:[%s2 + $0x28] sm:$0xf]
      %v440 = vld [vmem:[%s2 + $0x2c] sm:$0xf]
      %v441 = vld [vmem:[%s2 + $0x30] sm:$0xf]
      %v442 = vld [vmem:[%s2 + $0x34] sm:$0xf]
      %v443 = vld [vmem:[%s2 + $0x38] sm:$0xf]
      %v444 = vld [vmem:[%s2 + $0x3c] sm:$0xf]
      %v445 = vld [vmem:[%s2 + $0x40] sm:$0xf]
      %v446 = vld [vmem:[%s2 + $0x44] sm:$0xf]
      %v447 = vld [vmem:[%s2 + $0x48] sm:$0xf]
      %v448 = vld [vmem:[%s2 + $0x4c] sm:$0xf]
      %v449 = vld [vmem:[%s3] sm:$0x1]
      %v451 = vlaneseq
      %v452 = vshrl.u32 %v451, 7
      %v453 = vsub.s32 0, %v452
      %v454 = vrot.slane %v449, %v453
      %v460 = vunpack.c.l.b16 %v417
      %v461 = vunpack.c.h.b16 %v417
      %v462 = vunpack.c.l.b16 %v418
      %v463 = vunpack.c.h.b16 %v418
      %v464 = vunpack.c.l.b16 %v419
      %v465 = vunpack.c.h.b16 %v419
      %v466 = vunpack.c.l.b16 %v420
      %v467 = vunpack.c.h.b16 %v420
      %v468 = vpack.c.b16 %v462, %v460
      %v469 = vpack.c.b16 %v463, %v461
      %v470 = vpack.c.b16 %v466, %v464
      %v471 = vpack.c.b16 %v467, %v465
      %v494 = vunpack.c.l.b16 %v429
      %v495 = vunpack.c.l.b16 %v430
      %v496 = vunpack.c.l.b16 %v431
      %v497 = vunpack.c.l.b16 %v432
      %v498 = vunpack.c.l.b16 %v433
      %v499 = vunpack.c.l.b16 %v434
      %v500 = vunpack.c.l.b16 %v435
      %v501 = vunpack.c.l.b16 %v436
      %v502 = vunpack.c.l.b16 %v437
      %v503 = vunpack.c.l.b16 %v438
      %v504 = vunpack.c.l.b16 %v439
      %v505 = vunpack.c.l.b16 %v440
      %v506 = vunpack.c.l.b16 %v441
      %v507 = vunpack.c.l.b16 %v442
      %v508 = vunpack.c.l.b16 %v443
      %v509 = vunpack.c.l.b16 %v444
      %v510 = vunpack.c.l.b16 %v445
      %v511 = vunpack.c.l.b16 %v446
      %v512 = vunpack.c.l.b16 %v447
      %v513 = vunpack.c.l.b16 %v448
      %v514 = vpack.c.b16 %v495, %v494
      %v515 = vpack.c.b16 %v497, %v496
      %v516 = vpack.c.b16 %v499, %v498
      %v517 = vpack.c.b16 %v501, %v500
      %v518 = vpack.c.b16 %v503, %v502
      %v519 = vpack.c.b16 %v505, %v504
      %v520 = vpack.c.b16 %v507, %v506
      %v521 = vpack.c.b16 %v509, %v508
      %v522 = vpack.c.b16 %v511, %v510
      %v523 = vpack.c.b16 %v513, %v512
      %vm534 = vcmask 261120
      %v536 = vsel %vm534, %v469, 0
      %v539 = vsel %vm534, %v471, 0
      %541 = vmatprep.subr.bf16.mxu0 0
      %542 = vmatpush1.bf16.msra.mxu0 %v514
      %543 = vmatprep.subr.bf16.mxu0 0
      %544 = vmatpush1.bf16.msra.mxu0 %v515
      %545 = vmatprep.subr.bf16.mxu0 0
      %546 = vmatpush1.bf16.msra.mxu0 %v516
      %547 = vmatprep.subr.bf16.mxu0 0
      %548 = vmatpush1.bf16.msra.mxu0 %v517
      %549 = vmatprep.subr.bf16.mxu0 0
      %550 = vmatpush1.bf16.msra.mxu0 %v518
      %551 = vmatprep.subr.bf16.mxu0 0
      %552 = vmatpush1.bf16.msra.mxu0 %v519
      %553 = vmatprep.subr.bf16.mxu0 0
      %554 = vmatpush1.bf16.msra.mxu0 %v520
      %555 = vmatprep.subr.bf16.mxu0 0
      %556 = vmatpush1.bf16.msra.mxu0 %v521
      %557 = vmatprep.subr.bf16.mxu0 0
      %558 = vmatpush1.bf16.msra.mxu0 %v522
      %559 = vmatprep.subr.bf16.mxu0 0
      %560 = vmatpush1.bf16.msra.mxu0 %v523
      %561 = vmatprep.subr.bf16.mxu0 0
      %562 = vmatpush1.bf16.msra.mxu0 0
      %563 = vmatprep.subr.bf16.mxu0 0
      %564 = vmatpush1.bf16.msra.mxu0 0
      %565 = vmatprep.subr.bf16.mxu0 0
      %566 = vmatpush1.bf16.msra.mxu0 0
      %567 = vmatprep.subr.bf16.mxu0 0
      %568 = vmatpush1.bf16.msra.mxu0 0
      %569 = vmatprep.subr.bf16.mxu0 0
      %570 = vmatpush1.bf16.msra.mxu0 0
      %571 = vmatprep.subr.bf16.mxu0 0
      %572 = vmatpush1.bf16.msra.mxu0 0
      %573 = vmatprep.mubr.bf16.mxu0 %v536
      %574 = vmatmul.mubr.bf16.gmra.mrb[0].mxu0 %v468
      %v575 = vpop.f32.mrb[0].mxu0
      %v576 = vadd.f32 %v454, %v575
      %v577 = vpop.f32.mrb[0].mxu0
      %v578 = vpop.f32.mrb[0].mxu0
      %v579 = vadd.f32 %v454, %v578
      %v580 = vpop.f32.mrb[0].mxu0
      %581 = vmatprep.mubr.bf16.mxu0 %v539
      %582 = vmatmul.mubr.bf16.gmra.mrb[0].mxu0 %v470
      %v583 = vpop.f32.mrb[0].mxu0
      %v584 = vadd.f32 %v454, %v583
      %v585 = vpop.f32.mrb[0].mxu0
      %v586 = vpop.f32.mrb[0].mxu0
      %v587 = vadd.f32 %v454, %v586
      %v588 = vpop.f32.mrb[0].mxu0
      %589 = vdwg.mxu0
      %v590 = vmax.f32 %v576, 0.0
      %v591 = vmax.f32 %v579, 0.0
      %v592 = vmax.f32 %v584, 0.0
      %v593 = vmax.f32 %v587, 0.0
      %v594 = vpack.c.bf16 %v591, %v590
      %v595 = vpack.c.bf16 %v593, %v592
      %v596 = vld [vmem:[%s4] sm:$0xf]
      %v597 = vld [vmem:[%s4 + $0x4] sm:$0xf]
      %v598 = vld [vmem:[%s4 + $0x8] sm:$0xf]
      %v599 = vld [vmem:[%s4 + $0xc] sm:$0xf]
      %v600 = vld [vmem:[%s4 + $0x10] sm:$0xf]
      %v601 = vld [vmem:[%s4 + $0x14] sm:$0xf]
      %v602 = vld [vmem:[%s4 + $0x18] sm:$0xf]
      %v603 = vld [vmem:[%s4 + $0x1c] sm:$0xf]
      %v604 = vld [vmem:[%s4 + $0x20] sm:$0xf]
      %v605 = vld [vmem:[%s4 + $0x24] sm:$0xf]
      %v606 = vld [vmem:[%s4 + $0x28] sm:$0xf]
      %v607 = vld [vmem:[%s4 + $0x2c] sm:$0xf]
      %v608 = vld [vmem:[%s4 + $0x30] sm:$0xf]
      %v609 = vld [vmem:[%s4 + $0x34] sm:$0xf]
      %v610 = vld [vmem:[%s4 + $0x38] sm:$0xf]
      %v611 = vld [vmem:[%s4 + $0x3c] sm:$0xf]
      %v612 = vld [vmem:[%s5] sm:$0x1]
      %v614 = vlaneseq
      %v615 = vshrl.u32 %v614, 7
      %v616 = vsub.s32 0, %v615
      %v617 = vrot.slane %v612, %v616
      %v635 = vunpack.c.l.b16 %v596
      %v636 = vunpack.c.l.b16 %v597
      %v637 = vunpack.c.l.b16 %v598
      %v638 = vunpack.c.l.b16 %v599
      %v639 = vunpack.c.l.b16 %v600
      %v640 = vunpack.c.l.b16 %v601
      %v641 = vunpack.c.l.b16 %v602
      %v642 = vunpack.c.l.b16 %v603
      %v643 = vunpack.c.l.b16 %v604
      %v644 = vunpack.c.l.b16 %v605
      %v645 = vunpack.c.l.b16 %v606
      %v646 = vunpack.c.l.b16 %v607
      %v647 = vunpack.c.l.b16 %v608
      %v648 = vunpack.c.l.b16 %v609
      %v649 = vunpack.c.l.b16 %v610
      %v650 = vunpack.c.l.b16 %v611
      %v651 = vpack.c.b16 %v636, %v635
      %v652 = vpack.c.b16 %v638, %v637
      %v653 = vpack.c.b16 %v640, %v639
      %v654 = vpack.c.b16 %v642, %v641
      %v655 = vpack.c.b16 %v644, %v643
      %v656 = vpack.c.b16 %v646, %v645
      %v657 = vpack.c.b16 %v648, %v647
      %v658 = vpack.c.b16 %v650, %v649
      %667 = vmatprep.subr.bf16.mxu0 0
      %668 = vmatpush1.bf16.msra.mxu0 %v651
      %669 = vmatprep.subr.bf16.mxu0 0
      %670 = vmatpush1.bf16.msra.mxu0 %v652
      %671 = vmatprep.subr.bf16.mxu0 0
      %672 = vmatpush1.bf16.msra.mxu0 %v653
      %673 = vmatprep.subr.bf16.mxu0 0
      %674 = vmatpush1.bf16.msra.mxu0 %v654
      %675 = vmatprep.subr.bf16.mxu0 0
      %676 = vmatpush1.bf16.msra.mxu0 %v655
      %677 = vmatprep.subr.bf16.mxu0 0
      %678 = vmatpush1.bf16.msra.mxu0 %v656
      %679 = vmatprep.subr.bf16.mxu0 0
      %680 = vmatpush1.bf16.msra.mxu0 %v657
      %681 = vmatprep.subr.bf16.mxu0 0
      %682 = vmatpush1.bf16.msra.mxu0 %v658
      %683 = vmatprep.subr.bf16.mxu0 0
      %684 = vmatpush1.bf16.msra.mxu0 0
      %685 = vmatprep.subr.bf16.mxu0 0
      %686 = vmatpush1.bf16.msra.mxu0 0
      %687 = vmatprep.subr.bf16.mxu0 0
      %688 = vmatpush1.bf16.msra.mxu0 0
      %689 = vmatprep.subr.bf16.mxu0 0
      %690 = vmatpush1.bf16.msra.mxu0 0
      %691 = vmatprep.subr.bf16.mxu0 0
      %692 = vmatpush1.bf16.msra.mxu0 0
      %693 = vmatprep.subr.bf16.mxu0 0
      %694 = vmatpush1.bf16.msra.mxu0 0
      %695 = vmatprep.subr.bf16.mxu0 0
      %696 = vmatpush1.bf16.msra.mxu0 0
      %697 = vmatprep.subr.bf16.mxu0 0
      %698 = vmatpush1.bf16.msra.mxu0 0
      %699 = vmatprep.mubr.bf16.mxu0 0
      %700 = vmatmul.mubr.bf16.gmra.mrb[0].mxu0 %v594
      %v701 = vpop.f32.mrb[0].mxu0
      %v702 = vadd.f32 %v617, %v701
      %v703 = vpop.f32.mrb[0].mxu0
      %v704 = vpop.f32.mrb[0].mxu0
      %v705 = vadd.f32 %v617, %v704
      %v706 = vpop.f32.mrb[0].mxu0
      %707 = vmatprep.mubr.bf16.mxu0 0
      %708 = vmatmul.mubr.bf16.gmra.mrb[0].mxu0 %v595
      %v709 = vpop.f32.mrb[0].mxu0
      %v710 = vadd.f32 %v617, %v709
      %v711 = vpop.f32.mrb[0].mxu0
      %v712 = vpop.f32.mrb[0].mxu0
      %v713 = vadd.f32 %v617, %v712
      %v714 = vpop.f32.mrb[0].mxu0
      %715 = vdwg.mxu0
      %v716 = vmax.f32 %v702, 0.0
      %v717 = vmax.f32 %v705, 0.0
      %v718 = vmax.f32 %v710, 0.0
      %v719 = vmax.f32 %v713, 0.0
      %v720 = vpack.c.bf16 %v717, %v716
      %v721 = vpack.c.bf16 %v719, %v718
      %v722 = vld [vmem:[%s6] sm:$0xf]
      %v723 = vld [vmem:[%s6 + $0x4] sm:$0xf]
      %v724 = vld [vmem:[%s6 + $0x8] sm:$0xf]
      %v725 = vld [vmem:[%s6 + $0xc] sm:$0xf]
      %v726 = vld [vmem:[%s6 + $0x10] sm:$0xf]
      %v727 = vld [vmem:[%s6 + $0x14] sm:$0xf]
      %v728 = vld [vmem:[%s6 + $0x18] sm:$0xf]
      %v729 = vld [vmem:[%s6 + $0x1c] sm:$0xf]
      %v730 = vld [vmem:[%s6 + $0x20] sm:$0xf]
      %v731 = vld [vmem:[%s6 + $0x24] sm:$0xf]
      %v732 = vld [vmem:[%s6 + $0x28] sm:$0xf]
      %v733 = vld [vmem:[%s6 + $0x2c] sm:$0xf]
      %v734 = vld [vmem:[%s6 + $0x30] sm:$0xf]
      %v735 = vld [vmem:[%s6 + $0x34] sm:$0xf]
      %v736 = vld [vmem:[%s6 + $0x38] sm:$0xf]
      %v737 = vld [vmem:[%s6 + $0x3c] sm:$0xf]
      %v738 = vld [vmem:[%s7] sm:$0x1]
      %v740 = vlaneseq
      %v741 = vshrl.u32 %v740, 7
      %v742 = vsub.s32 0, %v741
      %v743 = vrot.slane %v738, %v742
      %v761 = vunpack.c.l.b16 %v722
      %v762 = vunpack.c.l.b16 %v723
      %v763 = vunpack.c.l.b16 %v724
      %v764 = vunpack.c.l.b16 %v725
      %v765 = vunpack.c.l.b16 %v726
      %v766 = vunpack.c.l.b16 %v727
      %v767 = vunpack.c.l.b16 %v728
      %v768 = vunpack.c.l.b16 %v729
      %v769 = vunpack.c.l.b16 %v730
      %v770 = vunpack.c.l.b16 %v731
      %v771 = vunpack.c.l.b16 %v732
      %v772 = vunpack.c.l.b16 %v733
      %v773 = vunpack.c.l.b16 %v734
      %v774 = vunpack.c.l.b16 %v735
      %v775 = vunpack.c.l.b16 %v736
      %v776 = vunpack.c.l.b16 %v737
      %v777 = vpack.c.b16 %v762, %v761
      %v778 = vpack.c.b16 %v764, %v763
      %v779 = vpack.c.b16 %v766, %v765
      %v780 = vpack.c.b16 %v768, %v767
      %v781 = vpack.c.b16 %v770, %v769
      %v782 = vpack.c.b16 %v772, %v771
      %v783 = vpack.c.b16 %v774, %v773
      %v784 = vpack.c.b16 %v776, %v775
      %793 = vmatprep.subr.bf16.mxu0 0
      %794 = vmatpush1.bf16.msra.mxu0 %v777
      %795 = vmatprep.subr.bf16.mxu0 0
      %796 = vmatpush1.bf16.msra.mxu0 %v778
      %797 = vmatprep.subr.bf16.mxu0 0
      %798 = vmatpush1.bf16.msra.mxu0 %v779
      %799 = vmatprep.subr.bf16.mxu0 0
      %800 = vmatpush1.bf16.msra.mxu0 %v780
      %801 = vmatprep.subr.bf16.mxu0 0
      %802 = vmatpush1.bf16.msra.mxu0 %v781
      %803 = vmatprep.subr.bf16.mxu0 0
      %804 = vmatpush1.bf16.msra.mxu0 %v782
      %805 = vmatprep.subr.bf16.mxu0 0
      %806 = vmatpush1.bf16.msra.mxu0 %v783
      %807 = vmatprep.subr.bf16.mxu0 0
      %808 = vmatpush1.bf16.msra.mxu0 %v784
      %809 = vmatprep.subr.bf16.mxu0 0
      %810 = vmatpush1.bf16.msra.mxu0 0
      %811 = vmatprep.subr.bf16.mxu0 0
      %812 = vmatpush1.bf16.msra.mxu0 0
      %813 = vmatprep.subr.bf16.mxu0 0
      %814 = vmatpush1.bf16.msra.mxu0 0
      %815 = vmatprep.subr.bf16.mxu0 0
      %816 = vmatpush1.bf16.msra.mxu0 0
      %817 = vmatprep.subr.bf16.mxu0 0
      %818 = vmatpush1.bf16.msra.mxu0 0
      %819 = vmatprep.subr.bf16.mxu0 0
      %820 = vmatpush1.bf16.msra.mxu0 0
      %821 = vmatprep.subr.bf16.mxu0 0
      %822 = vmatpush1.bf16.msra.mxu0 0
      %823 = vmatprep.subr.bf16.mxu0 0
      %824 = vmatpush1.bf16.msra.mxu0 0
      %825 = vmatprep.mubr.bf16.mxu0 0
      %826 = vmatmul.mubr.bf16.gmra.mrb[0].mxu0 %v720
      %v827 = vpop.f32.mrb[0].mxu0
      %v828 = vadd.f32 %v743, %v827
      %v829 = vpop.f32.mrb[0].mxu0
      %v830 = vpop.f32.mrb[0].mxu0
      %v831 = vadd.f32 %v743, %v830
      %v832 = vpop.f32.mrb[0].mxu0
      %833 = vmatprep.mubr.bf16.mxu0 0
      %834 = vmatmul.mubr.bf16.gmra.mrb[0].mxu0 %v721
      %v835 = vpop.f32.mrb[0].mxu0
      %v836 = vadd.f32 %v743, %v835
      %v837 = vpop.f32.mrb[0].mxu0
      %v838 = vpop.f32.mrb[0].mxu0
      %v839 = vadd.f32 %v743, %v838
      %v840 = vpop.f32.mrb[0].mxu0
      %841 = vdwg.mxu0
      %vm842 = vcmask 80896
      %v843 = vsel %vm842, %v828, -inf
      %844 = vmax.xlane.f32.xlu0 %v843
      %v845 = vpop.xlane.xlu0 %844
      %v846 = vsel %vm842, %v831, -inf
      %847 = vmax.xlane.f32.xlu0 %v846
      %v848 = vpop.xlane.xlu0 %847
      %v849 = vsel %vm842, %v836, -inf
      %850 = vmax.xlane.f32.xlu0 %v849
      %v851 = vpop.xlane.xlu0 %850
      %v852 = vsel %vm842, %v839, -inf
      %853 = vmax.xlane.f32.xlu0 %v852
      %v854 = vpop.xlane.xlu0 %853
      %v855 = vsub.f32 %v828, %v845
      %v856 = vsub.f32 %v831, %v848
      %v857 = vsub.f32 %v836, %v851
      %v858 = vsub.f32 %v839, %v854
      %v859 = vmul.f32 %v855, 1.442695
      %v860 = vpow.pop %v859
      %v861 = vmul.f32 %v856, 1.442695
      %v862 = vpow.pop %v861
      %v863 = vmul.f32 %v857, 1.442695
      %v864 = vpow.pop %v863
      %v865 = vmul.f32 %v858, 1.442695
      %v866 = vpow.pop %v865
      %v867 = vsel %vm842, %v860, 0.0
      %868 = vadd.xlane.f32.xlu0 %v867
      %v869 = vpop.xlane.xlu0 %868
      %v870 = vsel %vm842, %v862, 0.0
      %871 = vadd.xlane.f32.xlu0 %v870
      %v872 = vpop.xlane.xlu0 %871
      %v873 = vsel %vm842, %v864, 0.0
      %874 = vadd.xlane.f32.xlu0 %v873
      %v875 = vpop.xlane.xlu0 %874
      %v876 = vsel %vm842, %v866, 0.0
      %877 = vadd.xlane.f32.xlu0 %v876
      %v878 = vpop.xlane.xlu0 %877
      %v879 = vrcp.pop %v869
      %v880 = vrcp.pop %v872
      %v881 = vrcp.pop %v875
      %v882 = vrcp.pop %v878
      %v883 = vmul.f32 %v860, 10.0
      %v884 = vmul.f32 %v862, 10.0
      %v885 = vmul.f32 %v864, 10.0
      %v886 = vmul.f32 %v866, 10.0
      %v887 = vmul.f32 %v883, %v879
      %v888 = vmul.f32 %v884, %v880
      %v889 = vmul.f32 %v885, %v881
      %v890 = vmul.f32 %v886, %v882
      %v891 = vld [vmem:[%s8] sm:$0xff]
      %v892 = vld [vmem:[%s8 + $0x8] sm:$0xff]
      %v893 = vld [vmem:[%s8 + $0x10] sm:$0x3]
      %v894 = vld [vmem:[%s8 + $0x18] sm:$0x3]
      %v896 = vsel %vm842, %v887, 0
      %v899 = vsel %vm842, %v888, 0
      %v902 = vsel %vm842, %v889, 0
      %v905 = vsel %vm842, %v890, 0
      %vm907 = vcmask 1041408
      %v909 = vsel %vm907, %v893, 0
      %v912 = vsel %vm907, %v894, 0
      %914 = vmatprep.subr.mxu0 %v892
      %915 = vmatpush1.msra.mxu0 %v891
      %916 = vmatprep.subr.mxu0 %v912
      %917 = vmatpush1.msra.mxu0 %v909
      %918 = vmatprep.subr.mxu0 0.0
      %919 = vmatpush1.msra.mxu0 0.0
      %920 = vmatprep.subr.mxu0 0.0
      %921 = vmatpush1.msra.mxu0 0.0
      %922 = vmatprep.subr.mxu0 0.0
      %923 = vmatpush1.msra.mxu0 0.0
      %924 = vmatprep.subr.mxu0 0.0
      %925 = vmatpush1.msra.mxu0 0.0
      %926 = vmatprep.subr.mxu0 0.0
      %927 = vmatpush1.msra.mxu0 0.0
      %928 = vmatprep.subr.mxu0 0.0
      %929 = vmatpush1.msra.mxu0 0.0
      %930 = vmatprep.subr.mxu0 0.0
      %931 = vmatpush1.msra.mxu0 0.0
      %932 = vmatprep.subr.mxu0 0.0
      %933 = vmatpush1.msra.mxu0 0.0
      %934 = vmatprep.subr.mxu0 0.0
      %935 = vmatpush1.msra.mxu0 0.0
      %936 = vmatprep.subr.mxu0 0.0
      %937 = vmatpush1.msra.mxu0 0.0
      %938 = vmatprep.subr.mxu0 0.0
      %939 = vmatpush1.msra.mxu0 0.0
      %940 = vmatprep.subr.mxu0 0.0
      %941 = vmatpush1.msra.mxu0 0.0
      %942 = vmatprep.subr.mxu0 0.0
      %943 = vmatpush1.msra.mxu0 0.0
      %944 = vmatprep.subr.mxu0 0.0
      %945 = vmatpush1.msra.mxu0 0.0
      %946 = vmatprep.subr.mxu0 0.0
      %947 = vmatpush1.msra.mxu0 0.0
      %948 = vmatprep.subr.mxu0 0.0
      %949 = vmatpush1.msra.mxu0 0.0
      %950 = vmatprep.subr.mxu0 0.0
      %951 = vmatpush1.msra.mxu0 0.0
      %952 = vmatprep.subr.mxu0 0.0
      %953 = vmatpush1.msra.mxu0 0.0
      %954 = vmatprep.subr.mxu0 0.0
      %955 = vmatpush1.msra.mxu0 0.0
      %956 = vmatprep.subr.mxu0 0.0
      %957 = vmatpush1.msra.mxu0 0.0
      %958 = vmatprep.subr.mxu0 0.0
      %959 = vmatpush1.msra.mxu0 0.0
      %960 = vmatprep.subr.mxu0 0.0
      %961 = vmatpush1.msra.mxu0 0.0
      %962 = vmatprep.subr.mxu0 0.0
      %963 = vmatpush1.msra.mxu0 0.0
      %964 = vmatprep.subr.mxu0 0.0
      %965 = vmatpush1.msra.mxu0 0.0
      %966 = vmatprep.subr.mxu0 0.0
      %967 = vmatpush1.msra.mxu0 0.0
      %968 = vmatprep.subr.mxu0 0.0
      %969 = vmatpush1.msra.mxu0 0.0
      %970 = vmatprep.subr.mxu0 0.0
      %971 = vmatpush1.msra.mxu0 0.0
      %972 = vmatprep.subr.mxu0 0.0
      %973 = vmatpush1.msra.mxu0 0.0
      %974 = vmatprep.subr.mxu0 0.0
      %975 = vmatpush1.msra.mxu0 0.0
      %976 = vmatprep.subr.mxu0 0.0
      %977 = vmatpush1.msra.mxu0 0.0
      %978 = vmatprep.mubr.f32.mxu0 0.0
      %979 = vmatmul.mubr.f32.gmra.mrb[0].mxu0 %v896
      %v980 = vpop.f32.mrb[0].mxu0
      %v981 = vadd.f32 0.0, %v980
      %v982 = vpop.f32.mrb[0].mxu0
      %v983 = vadd.f32 0.0, %v982
      %984 = vmatprep.mubr.f32.mxu0 0.0
      %985 = vmatmul.mubr.f32.gmra.mrb[0].mxu0 %v899
      %v986 = vpop.f32.mrb[0].mxu0
      %v987 = vadd.f32 0.0, %v986
      %v988 = vpop.f32.mrb[0].mxu0
      %v989 = vadd.f32 0.0, %v988
      %990 = vmatprep.mubr.f32.mxu0 0.0
      %991 = vmatmul.mubr.f32.gmra.mrb[0].mxu0 %v902
      %v992 = vpop.f32.mrb[0].mxu0
      %v993 = vadd.f32 0.0, %v992
      %v994 = vpop.f32.mrb[0].mxu0
      %v995 = vadd.f32 0.0, %v994
      %996 = vmatprep.mubr.f32.mxu0 0.0
      %997 = vmatmul.mubr.f32.gmra.mrb[0].mxu0 %v905
      %v998 = vpop.f32.mrb[0].mxu0
      %v999 = vadd.f32 0.0, %v998
      %v1000 = vpop.f32.mrb[0].mxu0
      %v1001 = vadd.f32 0.0, %v1000
      %1002 = vdwg.mxu0
      %v1003 = vmul.f32 %v421, %v981
      %v1004 = vmul.f32 %v422, %v983
      %v1005 = vmul.f32 %v423, %v987
      %v1006 = vmul.f32 %v424, %v989
      %v1007 = vmul.f32 %v425, %v993
      %v1008 = vmul.f32 %v426, %v995
      %v1009 = vmul.f32 %v427, %v999
      %v1010 = vmul.f32 %v428, %v1001
      %v1011 = vld [vmem:[%s9] sm:$0xff]
      %v1012 = vld [vmem:[%s9 + $0x8] sm:$0xff]
      %v1013 = vld [vmem:[%s9 + $0x10] sm:$0xff]
      %v1014 = vld [vmem:[%s9 + $0x18] sm:$0xff]
      %v1015 = vld [vmem:[%s9 + $0x20] sm:$0xff]
      %v1016 = vld [vmem:[%s9 + $0x28] sm:$0xff]
      %v1017 = vld [vmem:[%s9 + $0x30] sm:$0xff]
      %v1018 = vld [vmem:[%s9 + $0x38] sm:$0xff]
      %v1019 = vld [vmem:[%s9 + $0x40] sm:$0xff]
      %v1020 = vld [vmem:[%s9 + $0x48] sm:$0xff]
      %v1021 = vld [vmem:[%s9 + $0x50] sm:$0xff]
      %v1022 = vld [vmem:[%s9 + $0x58] sm:$0xff]
      %v1023 = vld [vmem:[%s9 + $0x60] sm:$0xff]
      %v1024 = vld [vmem:[%s9 + $0x68] sm:$0xff]
      %v1025 = vld [vmem:[%s9 + $0x70] sm:$0xff]
      %v1026 = vld [vmem:[%s9 + $0x78] sm:$0xff]
      %v1027 = vld [vmem:[%s9 + $0x80] sm:$0xff]
      %v1028 = vld [vmem:[%s9 + $0x88] sm:$0xff]
      %v1029 = vld [vmem:[%s9 + $0x90] sm:$0xff]
      %v1030 = vld [vmem:[%s9 + $0x98] sm:$0xff]
      %v1032 = vsel %vm534, %v1004, 0
      %v1035 = vsel %vm534, %v1006, 0
      %v1038 = vsel %vm534, %v1008, 0
      %v1041 = vsel %vm534, %v1010, 0
      %1043 = vmatprep.subr.mxu0 0.0
      %1044 = vmatpush1.msra.mxu0 %v1011
      %1045 = vmatprep.subr.mxu0 0.0
      %1046 = vmatpush1.msra.mxu0 %v1012
      %1047 = vmatprep.subr.mxu0 0.0
      %1048 = vmatpush1.msra.mxu0 %v1013
      %1049 = vmatprep.subr.mxu0 0.0
      %1050 = vmatpush1.msra.mxu0 %v1014
      %1051 = vmatprep.subr.mxu0 0.0
      %1052 = vmatpush1.msra.mxu0 %v1015
      %1053 = vmatprep.subr.mxu0 0.0
      %1054 = vmatpush1.msra.mxu0 %v1016
      %1055 = vmatprep.subr.mxu0 0.0
      %1056 = vmatpush1.msra.mxu0 %v1017
      %1057 = vmatprep.subr.mxu0 0.0
      %1058 = vmatpush1.msra.mxu0 %v1018
      %1059 = vmatprep.subr.mxu0 0.0
      %1060 = vmatpush1.msra.mxu0 %v1019
      %1061 = vmatprep.subr.mxu0 0.0
      %1062 = vmatpush1.msra.mxu0 %v1020
      %1063 = vmatprep.subr.mxu0 0.0
      %1064 = vmatpush1.msra.mxu0 %v1021
      %1065 = vmatprep.subr.mxu0 0.0
      %1066 = vmatpush1.msra.mxu0 %v1022
      %1067 = vmatprep.subr.mxu0 0.0
      %1068 = vmatpush1.msra.mxu0 %v1023
      %1069 = vmatprep.subr.mxu0 0.0
      %1070 = vmatpush1.msra.mxu0 %v1024
      %1071 = vmatprep.subr.mxu0 0.0
      %1072 = vmatpush1.msra.mxu0 %v1025
      %1073 = vmatprep.subr.mxu0 0.0
      %1074 = vmatpush1.msra.mxu0 %v1026
      %1075 = vmatprep.subr.mxu0 0.0
      %1076 = vmatpush1.msra.mxu0 %v1027
      %1077 = vmatprep.subr.mxu0 0.0
      %1078 = vmatpush1.msra.mxu0 %v1028
      %1079 = vmatprep.subr.mxu0 0.0
      %1080 = vmatpush1.msra.mxu0 %v1029
      %1081 = vmatprep.subr.mxu0 0.0
      %1082 = vmatpush1.msra.mxu0 %v1030
      %1083 = vmatprep.subr.mxu0 0.0
      %1084 = vmatpush1.msra.mxu0 0.0
      %1085 = vmatprep.subr.mxu0 0.0
      %1086 = vmatpush1.msra.mxu0 0.0
      %1087 = vmatprep.subr.mxu0 0.0
      %1088 = vmatpush1.msra.mxu0 0.0
      %1089 = vmatprep.subr.mxu0 0.0
      %1090 = vmatpush1.msra.mxu0 0.0
      %1091 = vmatprep.subr.mxu0 0.0
      %1092 = vmatpush1.msra.mxu0 0.0
      %1093 = vmatprep.subr.mxu0 0.0
      %1094 = vmatpush1.msra.mxu0 0.0
      %1095 = vmatprep.subr.mxu0 0.0
      %1096 = vmatpush1.msra.mxu0 0.0
      %1097 = vmatprep.subr.mxu0 0.0
      %1098 = vmatpush1.msra.mxu0 0.0
      %1099 = vmatprep.subr.mxu0 0.0
      %1100 = vmatpush1.msra.mxu0 0.0
      %1101 = vmatprep.subr.mxu0 0.0
      %1102 = vmatpush1.msra.mxu0 0.0
      %1103 = vmatprep.subr.mxu0 0.0
      %1104 = vmatpush1.msra.mxu0 0.0
      %1105 = vmatprep.subr.mxu0 0.0
      %1106 = vmatpush1.msra.mxu0 0.0
      %1107 = vmatprep.mubr.f32.mxu0 %v1032
      %1108 = vmatmul.mubr.f32.gmra.mrb[0].mxu0 %v1003
      %v1109 = vpop.f32.mrb[0].mxu0
      %v1110 = vadd.f32 0.0, %v1109
      %v1111 = vpop.f32.mrb[0].mxu0
      %1112 = vmatprep.mubr.f32.mxu0 %v1035
      %1113 = vmatmul.mubr.f32.gmra.mrb[0].mxu0 %v1005
      %v1114 = vpop.f32.mrb[0].mxu0
      %v1115 = vadd.f32 0.0, %v1114
      %v1116 = vpop.f32.mrb[0].mxu0
      %1117 = vmatprep.mubr.f32.mxu0 %v1038
      %1118 = vmatmul.mubr.f32.gmra.mrb[0].mxu0 %v1007
      %v1119 = vpop.f32.mrb[0].mxu0
      %v1120 = vadd.f32 0.0, %v1119
      %v1121 = vpop.f32.mrb[0].mxu0
      %1122 = vmatprep.mubr.f32.mxu0 %v1041
      %1123 = vmatmul.mubr.f32.gmra.mrb[0].mxu0 %v1009
      %v1124 = vpop.f32.mrb[0].mxu0
      %v1125 = vadd.f32 0.0, %v1124
      %v1126 = vpop.f32.mrb[0].mxu0
      %1127 = vdwg.mxu0
      %v1128 = vmul.f32 %v1110, %v1110
      %v1129 = vmul.f32 %v1115, %v1115
      %v1130 = vmul.f32 %v1120, %v1120
      %v1131 = vmul.f32 %v1125, %v1125
      %vm1132 = vcmask 130048
      %v1133 = vsel %vm1132, %v1128, 0.0
      %1134 = vadd.xlane.f32.xlu0 %v1133
      %v1135 = vpop.xlane.xlu0 %1134
      %v1136 = vsel %vm1132, %v1129, 0.0
      %1137 = vadd.xlane.f32.xlu0 %v1136
      %v1138 = vpop.xlane.xlu0 %1137
      %v1139 = vsel %vm1132, %v1130, 0.0
      %1140 = vadd.xlane.f32.xlu0 %v1139
      %v1141 = vpop.xlane.xlu0 %1140
      %v1142 = vsel %vm1132, %v1131, 0.0
      %1143 = vadd.xlane.f32.xlu0 %v1142
      %v1144 = vpop.xlane.xlu0 %1143
      %v1145 = vmul.f32 %v1003, %v1003
      %v1146 = vmul.f32 %v1004, %v1004
      %v1147 = vmul.f32 %v1005, %v1005
      %v1148 = vmul.f32 %v1006, %v1006
      %v1149 = vmul.f32 %v1007, %v1007
      %v1150 = vmul.f32 %v1008, %v1008
      %v1151 = vmul.f32 %v1009, %v1009
      %v1152 = vmul.f32 %v1010, %v1010
      %v1153 = vsel %vm534, %v1146, 0.0
      %v1154 = vadd.f32 %v1145, %v1153
      %1155 = vadd.xlane.f32.xlu0 %v1154
      %v1156 = vpop.xlane.xlu0 %1155
      %v1157 = vsel %vm534, %v1148, 0.0
      %v1158 = vadd.f32 %v1147, %v1157
      %1159 = vadd.xlane.f32.xlu0 %v1158
      %v1160 = vpop.xlane.xlu0 %1159
      %v1161 = vsel %vm534, %v1150, 0.0
      %v1162 = vadd.f32 %v1149, %v1161
      %1163 = vadd.xlane.f32.xlu0 %v1162
      %v1164 = vpop.xlane.xlu0 %1163
      %v1165 = vsel %vm534, %v1152, 0.0
      %v1166 = vadd.f32 %v1151, %v1165
      %1167 = vadd.xlane.f32.xlu0 %v1166
      %v1168 = vpop.xlane.xlu0 %1167
      %v1169 = vsub.f32 %v1135, %v1156
      %v1170 = vsub.f32 %v1138, %v1160
      %v1171 = vsub.f32 %v1141, %v1164
      %v1172 = vsub.f32 %v1144, %v1168
      %v1173 = vmul.f32 %v1169, 0.5
      %v1174 = vmul.f32 %v1170, 0.5
      %v1175 = vmul.f32 %v1171, 0.5
      %v1176 = vmul.f32 %v1172, 0.5
      %v1177 = vld [vmem:[%s408] sm:$0xff]
      %v1178 = vld [vmem:[%s408 + $0x8] sm:$0xff]
      %v1179 = vld [vmem:[%s408 + $0x10] sm:$0xff]
      %v1180 = vld [vmem:[%s408 + $0x18] sm:$0xff]
      %v1181 = vmul.f32 %v1177, %v887
      %v1182 = vmul.f32 %v1178, %v888
      %v1183 = vmul.f32 %v1179, %v889
      %v1184 = vmul.f32 %v1180, %v890
      %v1185 = vsel %vm842, %v1181, 0.0
      %1186 = vadd.xlane.f32.xlu0 %v1185
      %v1187 = vpop.xlane.xlu0 %1186
      %v1188 = vsel %vm842, %v1182, 0.0
      %1189 = vadd.xlane.f32.xlu0 %v1188
      %v1190 = vpop.xlane.xlu0 %1189
      %v1191 = vsel %vm842, %v1183, 0.0
      %1192 = vadd.xlane.f32.xlu0 %v1191
      %v1193 = vpop.xlane.xlu0 %1192
      %v1194 = vsel %vm842, %v1184, 0.0
      %1195 = vadd.xlane.f32.xlu0 %v1194
      %v1196 = vpop.xlane.xlu0 %1195
      %s1197 = sld [smem:[#allocation2]]
      %v1198 = vstv %s1197
      %v1199 = vadd.f32 %v1187, %v1198
      %v1200 = vadd.f32 %v1190, %v1198
      %v1201 = vadd.f32 %v1193, %v1198
      %v1202 = vadd.f32 %v1196, %v1198
      %v1203 = vadd.f32 %v1199, %v1173
      %v1204 = vadd.f32 %v1200, %v1174
      %v1205 = vadd.f32 %v1201, %v1175
      %v1206 = vadd.f32 %v1202, %v1176
      %vm1207 = vcmask 7168
      %1208 = vst.msk [vmem:[%s414] sm:$0xff] %vm1207, %v1203
      %1209 = vst.msk [vmem:[%s414 + $0x8] sm:$0xff] %vm1207, %v1204
      %1210 = vst.msk [vmem:[%s414 + $0x10] sm:$0xff] %vm1207, %v1205
      %1211 = vst.msk [vmem:[%s414 + $0x18] sm:$0xff] %vm1207, %v1206
      %s1212 = smul.u32 4, %s23
      %p1213 = scmp.lt.s32.totalorder %s1212, 7
      %s1214 = scalar_select %p1213, %s1212, 7
      %s1215 = smul.addr %s1214, 8
      %s1216 = scalar_lea.vmem %s11, %s1215
      // Predicated region
      $region65: #{_lambda_.1} parent=63 // pred_check
        %p1217 = pneg %p282
      $region66: #{_lambda_.1} parent=63 // pred_check_branch
        %1219 = sbr.rel (%p1217) target = $region68
      $region67: #{_lambda_.1} parent=63 // pred_region
        %s1220 = smul.u32 4, %s23
      $region68: #{_lambda_.1} parent=63 // pred_fallthru
        _
    $region64: #{_lambda_.1} parent=5 // pred_fallthru
      _
    %p1221 = scmp.le.s32.totalorder 2, %s18
    // Predicated region
    $region69: #{_lambda_.1} parent=5 // pred_check
      %p1222 = pneg %p1221
    $region70: #{_lambda_.1} parent=5 // pred_check_branch
      %1224 = sbr.rel (%p1222) target = $region72
    $region71: #{_lambda_.1} parent=5 // pred_region
      %s1225 = ssub.s32 %s18, 2
      // Predicated region
      $region73: #{_lambda_.1} parent=71 // pred_check
        %p1226 = pneg %p288
      $region74: #{_lambda_.1} parent=71 // pred_check_branch
        %1228 = sbr.rel (%p1226) target = $region76
      $region75: #{_lambda_.1} parent=71 // pred_region
        %s1229 = smul.u32 4, %s24
        %p1230 = scmp.lt.s32.totalorder %s1229, 7
        %s1231 = scalar_select %p1230, %s1229, 7
        %s1232 = smul.addr %s1231, 8
        %s1233 = scalar_lea.vmem %s11, %s1232
      $region76: #{_lambda_.1} parent=71 // pred_fallthru
        _
    $region72: #{_lambda_.1} parent=5 // pred_fallthru
      _
  $region6: #{_lambda_.1} parent=0 // loop_footer
    %s22 = sadd.s32 1, %s18
  $region7: #{_lambda_.1} parent=0 // loop_footer_branch
    %17 = sbr.rel target = $region3
  $region8: #{_lambda_.1} parent=0 // loop_exit
    _

</llo_original>
